<compile_context>
chip_gen: v5e
topology: v5e:2x2
jax: 0.10.0
libtpu: 0.0.40
codegen_flags: <defaults>
</compile_context>

<pallas_src>
import functools

import jax
import jax.numpy as jnp
from jax import lax
from jax.experimental import pallas as pl
from jax.experimental.pallas import tpu as pltpu

EPS = 1e-5
LANE = 128


# ------------------------------- Pallas kernel ------------------------------ #

def _bottleneck_kernel(x_ref, w1_ref, b1_ref, w2_ref, b2_ref, w3_ref, b3_ref,
                       o_ref, pad_ref, *, H, W):
    """Fused bottleneck for one image.

    x_ref : (1, H*W, Cp) f32   input (channels zero-padded to Cp; also residual)
    w1_ref: (Cp, Cp)     bf16  1x1 conv1 weight with bn1 scale folded in
    b1_ref: (1, Cp)      f32   bn1 shift
    w2_ref: (9*Cp, Cp)   bf16  3x3 conv2 weight (ky,kx,cin flattened), bn2 scale folded
    b2_ref: (1, Cp)      f32   bn2 shift
    w3_ref: (Cp, Cp)     bf16  1x1 conv3 weight with bn3 scale folded in
    b3_ref: (1, Cp)      f32   bn3 shift
    o_ref : (1, H*W, Cp) f32   output
    pad_ref: VMEM scratch (H+2, W+2, Cp) f32 for spatial zero padding
    """
    Cp = x_ref.shape[-1]
    x = x_ref[0]                                      # (H*W, Cp) f32 residual

    # conv1 (1x1) + bn1 + relu.  bf16 MXU operands, f32 accumulate/epilogue.
    t1 = jnp.dot(x.astype(jnp.bfloat16), w1_ref[...],
                 preferred_element_type=jnp.float32)
    t1 = jnp.maximum(t1 + b1_ref[...], 0.0)           # (H*W, Cp) f32

    # Spatial zero-padding of the conv1 output done entirely in VMEM.
    pad_ref[...] = jnp.zeros_like(pad_ref)
    pad_ref[1:H + 1, 1:W + 1, :] = t1.reshape(H, W, Cp)

    # conv2 (3x3, stride 1, pad 1): one wide-K matmul over the 9-tap im2col
    # matrix (K = 9*Cp) instead of 9 tiny dots.
    taps = jnp.concatenate(
        [pad_ref[ky:ky + H, kx:kx + W, :].reshape(H * W, Cp)
         for ky in range(3) for kx in range(3)],
        axis=-1)                                       # (H*W, 9*Cp) f32
    t2 = jnp.dot(taps.astype(jnp.bfloat16), w2_ref[...],
                 preferred_element_type=jnp.float32)
    t2 = jnp.maximum(t2 + b2_ref[...], 0.0)            # (H*W, Cp) f32

    # conv3 (1x1) + bn3 + residual add + relu.
    t3 = jnp.dot(t2.astype(jnp.bfloat16), w3_ref[...],
                 preferred_element_type=jnp.float32)
    y = t3 + b3_ref[...] + x
    o_ref[...] = jnp.maximum(y, 0.0)[None].astype(o_ref.dtype)


# --------------------------- parameter preparation -------------------------- #

def _fold_bn(bn_params, d):
    """Fold running stats of the selected BN (domain d) into scale/shift."""
    gamma, beta, mean, var = bn_params
    scale = gamma[d] / jnp.sqrt(var[d] + EPS)
    shift = beta[d] - mean[d] * scale
    return scale, shift


def _prep_weights(params, domain_label, Cp):
    """BN scale folded into weights, channels padded to Cp, bf16 MXU operands."""
    d = domain_label  # works for python ints and traced integer scalars

    s1, b1 = _fold_bn(params['bn1'], d)
    s2, b2 = _fold_bn(params['bn2'], d)
    s3, b3 = _fold_bn(params['bn3'], d)

    def pad2(m):                                   # (cin, cout) -> (Cp, Cp)
        return jnp.pad(m, ((0, Cp - m.shape[0]), (0, Cp - m.shape[1])))

    def padb(v):                                   # (cout,) -> (1, Cp) f32
        return jnp.pad(v, (0, Cp - v.shape[0]))[None, :].astype(jnp.float32)

    w1 = pad2(params['w1'] * s1[None, :]).astype(jnp.bfloat16)
    w3 = pad2(params['w3'] * s3[None, :]).astype(jnp.bfloat16)

    w2 = params['w2'] * s2[None, None, None, :]    # (3,3,cin,cout), scale on cout
    w2 = jnp.pad(w2, ((0, 0), (0, 0),
                      (0, Cp - w2.shape[2]), (0, Cp - w2.shape[3])))
    w2 = w2.reshape(9 * Cp, Cp).astype(jnp.bfloat16)   # ky-major, kx, cin order

    return w1, padb(b1), w2, padb(b2), w3, padb(b3)


# ------------------------------ Bottleneck glue ----------------------------- #

def bottleneck_forward(x_nhwc, params, domain_label):
    N, H, W, Cin = x_nhwc.shape
    planes = params['w1'].shape[1]
    Cexp = params['w3'].shape[1]
    assert Cin == Cexp, "stride=1 / downsample=None path requires inplanes == 4*planes"

    # Single lane-dense channel width used throughout the block.
    Cp = ((max(Cin, planes, Cexp) + LANE - 1) // LANE) * LANE

    w1, b1, w2, b2, w3, b3 = _prep_weights(params, domain_label, Cp)

    xp = jnp.pad(x_nhwc, ((0, 0), (0, 0), (0, 0), (0, Cp - Cin)))
    xp = xp.reshape(N, H * W, Cp).astype(jnp.float32)

    kernel = functools.partial(_bottleneck_kernel, H=H, W=W)
    out = pl.pallas_call(
        kernel,
        out_shape=jax.ShapeDtypeStruct((N, H * W, Cp), jnp.float32),
        grid=(N,),
        in_specs=[
            pl.BlockSpec((1, H * W, Cp), lambda n: (n, 0, 0)),   # x / residual
            pl.BlockSpec((Cp, Cp), lambda n: (0, 0)),            # w1 (folded)
            pl.BlockSpec((1, Cp), lambda n: (0, 0)),             # bn1 shift
            pl.BlockSpec((9 * Cp, Cp), lambda n: (0, 0)),        # w2 (folded)
            pl.BlockSpec((1, Cp), lambda n: (0, 0)),             # bn2 shift
            pl.BlockSpec((Cp, Cp), lambda n: (0, 0)),            # w3 (folded)
            pl.BlockSpec((1, Cp), lambda n: (0, 0)),             # bn3 shift
        ],
        out_specs=pl.BlockSpec((1, H * W, Cp), lambda n: (n, 0, 0)),
        scratch_shapes=[pltpu.VMEM((H + 2, W + 2, Cp), jnp.float32)],
        compiler_params=pltpu.CompilerParams(
            dimension_semantics=("parallel",),        # shard images over TCs (v7x)
            vmem_limit_bytes=32 * 1024 * 1024),
    )(xp, w1, b1, w2, b2, w3, b3)

    out = out.reshape(N, H, W, Cp)[..., :Cexp]        # drop lane padding once
    return out, domain_label


# ------------------------------ JAX reference ------------------------------- #

def reference_forward(x_nhwc, params, domain_label):
    d = domain_label
    dn = ('NHWC', 'HWIO', 'NHWC')

    def bn(y, p):
        gamma, beta, mean, var = p
        return gamma[d] * (y - mean[d]) / jnp.sqrt(var[d] + EPS) + beta[d]

    w1 = params['w1'][None, None]                      # (1,1,Cin,planes)
    out = lax.conv_general_dilated(x_nhwc, w1, (1, 1), 'VALID',
                                   dimension_numbers=dn)
    out = jax.nn.relu(bn(out, params['bn1']))
    out = lax.conv_general_dilated(out, params['w2'], (1, 1),
                                   ((1, 1), (1, 1)), dimension_numbers=dn)
    out = jax.nn.relu(bn(out, params['bn2']))
    w3 = params['w3'][None, None]                      # (1,1,planes,4*planes)
    out = lax.conv_general_dilated(out, w3, (1, 1), 'VALID',
                                   dimension_numbers=dn)
    out = bn(out, params['bn3'])
    out = out + x_nhwc
    return jax.nn.relu(out), domain_label


# --------------------------------- main ------------------------------------- #

def make_params(key, inplanes, planes, num_bns):
    exp = 4
    ks = jax.random.split(key, 12)

    def bn_params(k, c):
        k1, k2, k3, k4 = jax.random.split(k, 4)
        gamma = 1.0 + 0.1 * jax.random.normal(k1, (num_bns, c), jnp.float32)
        beta = 0.1 * jax.random.normal(k2, (num_bns, c), jnp.float32)
        mean = 0.1 * jax.random.normal(k3, (num_bns, c), jnp.float32)
        var = 0.5 + jnp.abs(jax.random.normal(k4, (num_bns, c), jnp.float32))
        return (gamma, beta, mean, var)

    params = {
        # conv1: 1x1, (inplanes -> planes), stored as (Cin, Cout)
        'w1': 0.1 * jax.random.normal(ks[0], (inplanes, planes), jnp.float32),
        # conv2: 3x3, (planes -> planes), stored HWIO
        'w2': 0.1 * jax.random.normal(ks[1], (3, 3, planes, planes),
                                      jnp.float32),
        # conv3: 1x1, (planes -> 4*planes), stored as (Cin, Cout)
        'w3': 0.1 * jax.random.normal(ks[2], (planes, planes * exp),
                                      jnp.float32),
        'bn1': bn_params(ks[3], planes),
        'bn2': bn_params(ks[4], planes),
        'bn3': bn_params(ks[5], planes * exp),
    }
    return params


if __name__ == "__main__":
    key = jax.random.PRNGKey(0)
    kx, kp = jax.random.split(key)

    # Small shapes consistent with the module: inplanes == planes*4, stride=1,
    # downsample=None so the residual add is valid.
    N, H, W = 2, 16, 16
    planes = 4
    inplanes = planes * 4          # 16
    num_bns = 2
    domain_label = 1               # selects the second BN set (MultiBatchNorm)

    x = jax.random.normal(kx, (N, H, W, inplanes), jnp.float32)  # NHWC
    params = make_params(kp, inplanes, planes, num_bns)

    out, dom = bottleneck_forward(x, params, domain_label)
    out = jax.block_until_ready(out)

    ref, _ = reference_forward(x, params, domain_label)
    ref = jax.block_until_ready(ref)

    # bf16 MXU operands (f32 accumulation) vs. pure-f32 reference -> loosened
    # tolerance, as anticipated in the performance review.
    if not bool(jnp.allclose(out, ref, atol=2e-2, rtol=2e-2)):
        raise AssertionError(
            f"mismatch vs reference, max abs err = "
            f"{float(jnp.max(jnp.abs(out - ref)))}")

    print("KERNEL_OK")
</pallas_src>

<mosaic_0001>
module attributes {stable_mosaic.version = 11 : i64} {
  func.func @_bottleneck_kernel(%arg0: i32, %arg1: memref<1x256x128xf32, #tpu.memory_space<vmem>>, %arg2: memref<128x128xbf16, #tpu.memory_space<vmem>>, %arg3: memref<1x128xf32, #tpu.memory_space<vmem>>, %arg4: memref<1152x128xbf16, #tpu.memory_space<vmem>>, %arg5: memref<1x128xf32, #tpu.memory_space<vmem>>, %arg6: memref<128x128xbf16, #tpu.memory_space<vmem>>, %arg7: memref<1x128xf32, #tpu.memory_space<vmem>>, %arg8: memref<1x256x128xf32, #tpu.memory_space<vmem>>, %arg9: memref<18x18x128xf32, #tpu.memory_space<vmem>>) attributes {dimension_semantics = [#tpu.dimension_semantics<parallel>], iteration_bounds = array<i64: 2>, scalar_prefetch = 0 : i64, scratch_operands = 1 : i64, tpu.core_type = #tpu.core_type<tc>, window_params = [{transform_indices = @transform_0, window_bounds = array<i64: 1, 256, 128>}, {pipeline_mode = #tpu.pipeline_mode<synchronous>, transform_indices = @transform_1, window_bounds = array<i64: 128, 128>}, {pipeline_mode = #tpu.pipeline_mode<synchronous>, transform_indices = @transform_2, window_bounds = array<i64: 1, 128>}, {pipeline_mode = #tpu.pipeline_mode<synchronous>, transform_indices = @transform_3, window_bounds = array<i64: 1152, 128>}, {pipeline_mode = #tpu.pipeline_mode<synchronous>, transform_indices = @transform_4, window_bounds = array<i64: 1, 128>}, {pipeline_mode = #tpu.pipeline_mode<synchronous>, transform_indices = @transform_5, window_bounds = array<i64: 128, 128>}, {pipeline_mode = #tpu.pipeline_mode<synchronous>, transform_indices = @transform_6, window_bounds = array<i64: 1, 128>}, {transform_indices = @transform_7, window_bounds = array<i64: 1, 256, 128>}]} {
    %c0 = arith.constant 0 : index
    %c0_0 = arith.constant 0 : index
    %c0_1 = arith.constant 0 : index
    %0 = vector.load %arg1[%c0, %c0_0, %c0_1] : memref<1x256x128xf32, #tpu.memory_space<vmem>>, vector<1x256x128xf32>
    %1 = vector.shape_cast %0 : vector<1x256x128xf32> to vector<256x128xf32>
    %2 = arith.truncf %1 : vector<256x128xf32> to vector<256x128xbf16>
    %c0_2 = arith.constant 0 : index
    %c0_3 = arith.constant 0 : index
    %3 = vector.load %arg2[%c0_2, %c0_3] : memref<128x128xbf16, #tpu.memory_space<vmem>>, vector<128x128xbf16>
    %cst = arith.constant dense<0.000000e+00> : vector<256x128xf32>
    %4 = tpu.matmul %2, %3, %cst {dimension_numbers = #tpu.dot_dimension_numbers<[1], [0], [0], [1], [0, 0, 1, 1], [], []>} : vector<256x128xbf16>, vector<128x128xbf16>, vector<256x128xf32> -> vector<256x128xf32>
    %c0_4 = arith.constant 0 : index
    %c0_5 = arith.constant 0 : index
    %5 = vector.load %arg3[%c0_4, %c0_5] : memref<1x128xf32, #tpu.memory_space<vmem>>, vector<1x128xf32>
    %6 = vector.broadcast %5 : vector<1x128xf32> to vector<256x128xf32>
    %7 = arith.addf %4, %6 : vector<256x128xf32>
    %cst_6 = arith.constant 0.000000e+00 : f32
    %8 = vector.broadcast %cst_6 : f32 to vector<256x128xf32>
    %9 = arith.maximumf %7, %8 : vector<256x128xf32>
    %cst_7 = arith.constant 0.000000e+00 : f32
    %10 = vector.broadcast %cst_7 : f32 to vector<18x18x128xf32>
    %c0_8 = arith.constant 0 : index
    %c0_9 = arith.constant 0 : index
    %c0_10 = arith.constant 0 : index
    %11 = vector.load %arg9[%c0_8, %c0_9, %c0_10] : memref<18x18x128xf32, #tpu.memory_space<vmem>>, vector<18x18x128xf32>
    tpu.vector_store %arg9[%c0_8, %c0_9, %c0_10], %10 {strides = array<i32>} : memref<18x18x128xf32, #tpu.memory_space<vmem>>, vector<18x18x128xf32>,
    %12 = vector.shape_cast %9 : vector<256x128xf32> to vector<16x16x128xf32>
    %c1 = arith.constant 1 : index
    %c1_11 = arith.constant 1 : index
    %c0_12 = arith.constant 0 : index
    %13 = vector.load %arg9[%c1, %c1_11, %c0_12] : memref<18x18x128xf32, #tpu.memory_space<vmem>>, vector<16x16x128xf32>
    tpu.vector_store %arg9[%c1, %c1_11, %c0_12], %12 {strides = array<i32>} : memref<18x18x128xf32, #tpu.memory_space<vmem>>, vector<16x16x128xf32>,
    %c0_13 = arith.constant 0 : index
    %c0_14 = arith.constant 0 : index
    %c0_15 = arith.constant 0 : index
    %14 = vector.load %arg9[%c0_13, %c0_14, %c0_15] : memref<18x18x128xf32, #tpu.memory_space<vmem>>, vector<16x16x128xf32>
    %15 = vector.shape_cast %14 : vector<16x16x128xf32> to vector<256x128xf32>
    %c0_16 = arith.constant 0 : index
    %c1_17 = arith.constant 1 : index
    %c0_18 = arith.constant 0 : index
    %16 = vector.load %arg9[%c0_16, %c1_17, %c0_18] : memref<18x18x128xf32, #tpu.memory_space<vmem>>, vector<16x16x128xf32>
    %17 = vector.shape_cast %16 : vector<16x16x128xf32> to vector<256x128xf32>
    %c0_19 = arith.constant 0 : index
    %c2 = arith.constant 2 : index
    %c0_20 = arith.constant 0 : index
    %18 = vector.load %arg9[%c0_19, %c2, %c0_20] : memref<18x18x128xf32, #tpu.memory_space<vmem>>, vector<16x16x128xf32>
    %19 = vector.shape_cast %18 : vector<16x16x128xf32> to vector<256x128xf32>
    %c1_21 = arith.constant 1 : index
    %c0_22 = arith.constant 0 : index
    %c0_23 = arith.constant 0 : index
    %20 = vector.load %arg9[%c1_21, %c0_22, %c0_23] : memref<18x18x128xf32, #tpu.memory_space<vmem>>, vector<16x16x128xf32>
    %21 = vector.shape_cast %20 : vector<16x16x128xf32> to vector<256x128xf32>
    %c1_24 = arith.constant 1 : index
    %c1_25 = arith.constant 1 : index
    %c0_26 = arith.constant 0 : index
    %22 = vector.load %arg9[%c1_24, %c1_25, %c0_26] : memref<18x18x128xf32, #tpu.memory_space<vmem>>, vector<16x16x128xf32>
    %23 = vector.shape_cast %22 : vector<16x16x128xf32> to vector<256x128xf32>
    %c1_27 = arith.constant 1 : index
    %c2_28 = arith.constant 2 : index
    %c0_29 = arith.constant 0 : index
    %24 = vector.load %arg9[%c1_27, %c2_28, %c0_29] : memref<18x18x128xf32, #tpu.memory_space<vmem>>, vector<16x16x128xf32>
    %25 = vector.shape_cast %24 : vector<16x16x128xf32> to vector<256x128xf32>
    %c2_30 = arith.constant 2 : index
    %c0_31 = arith.constant 0 : index
    %c0_32 = arith.constant 0 : index
    %26 = vector.load %arg9[%c2_30, %c0_31, %c0_32] : memref<18x18x128xf32, #tpu.memory_space<vmem>>, vector<16x16x128xf32>
    %27 = vector.shape_cast %26 : vector<16x16x128xf32> to vector<256x128xf32>
    %c2_33 = arith.constant 2 : index
    %c1_34 = arith.constant 1 : index
    %c0_35 = arith.constant 0 : index
    %28 = vector.load %arg9[%c2_33, %c1_34, %c0_35] : memref<18x18x128xf32, #tpu.memory_space<vmem>>, vector<16x16x128xf32>
    %29 = vector.shape_cast %28 : vector<16x16x128xf32> to vector<256x128xf32>
    %c2_36 = arith.constant 2 : index
    %c2_37 = arith.constant 2 : index
    %c0_38 = arith.constant 0 : index
    %30 = vector.load %arg9[%c2_36, %c2_37, %c0_38] : memref<18x18x128xf32, #tpu.memory_space<vmem>>, vector<16x16x128xf32>
    %31 = vector.shape_cast %30 : vector<16x16x128xf32> to vector<256x128xf32>
    %32 = tpu.concatenate %15, %17, %19, %21, %23, %25, %27, %29, %31 in 1 : vector<256x128xf32>, vector<256x128xf32>, vector<256x128xf32>, vector<256x128xf32>, vector<256x128xf32>, vector<256x128xf32>, vector<256x128xf32>, vector<256x128xf32>, vector<256x128xf32> -> vector<256x1152xf32>
    %33 = arith.truncf %32 : vector<256x1152xf32> to vector<256x1152xbf16>
    %c0_39 = arith.constant 0 : index
    %c0_40 = arith.constant 0 : index
    %34 = vector.load %arg4[%c0_39, %c0_40] : memref<1152x128xbf16, #tpu.memory_space<vmem>>, vector<1152x128xbf16>
    %cst_41 = arith.constant dense<0.000000e+00> : vector<256x128xf32>
    %35 = tpu.matmul %33, %34, %cst_41 {dimension_numbers = #tpu.dot_dimension_numbers<[1], [0], [0], [1], [0, 0, 1, 1], [], []>} : vector<256x1152xbf16>, vector<1152x128xbf16>, vector<256x128xf32> -> vector<256x128xf32>
    %c0_42 = arith.constant 0 : index
    %c0_43 = arith.constant 0 : index
    %36 = vector.load %arg5[%c0_42, %c0_43] : memref<1x128xf32, #tpu.memory_space<vmem>>, vector<1x128xf32>
    %37 = vector.broadcast %36 : vector<1x128xf32> to vector<256x128xf32>
    %38 = arith.addf %35, %37 : vector<256x128xf32>
    %cst_44 = arith.constant 0.000000e+00 : f32
    %39 = vector.broadcast %cst_44 : f32 to vector<256x128xf32>
    %40 = arith.maximumf %38, %39 : vector<256x128xf32>
    %41 = arith.truncf %40 : vector<256x128xf32> to vector<256x128xbf16>
    %c0_45 = arith.constant 0 : index
    %c0_46 = arith.constant 0 : index
    %42 = vector.load %arg6[%c0_45, %c0_46] : memref<128x128xbf16, #tpu.memory_space<vmem>>, vector<128x128xbf16>
    %cst_47 = arith.constant dense<0.000000e+00> : vector<256x128xf32>
    %43 = tpu.matmul %41, %42, %cst_47 {dimension_numbers = #tpu.dot_dimension_numbers<[1], [0], [0], [1], [0, 0, 1, 1], [], []>} : vector<256x128xbf16>, vector<128x128xbf16>, vector<256x128xf32> -> vector<256x128xf32>
    %c0_48 = arith.constant 0 : index
    %c0_49 = arith.constant 0 : index
    %44 = vector.load %arg7[%c0_48, %c0_49] : memref<1x128xf32, #tpu.memory_space<vmem>>, vector<1x128xf32>
    %45 = vector.broadcast %44 : vector<1x128xf32> to vector<256x128xf32>
    %46 = arith.addf %43, %45 : vector<256x128xf32>
    %47 = arith.addf %46, %1 : vector<256x128xf32>
    %cst_50 = arith.constant 0.000000e+00 : f32
    %48 = vector.broadcast %cst_50 : f32 to vector<256x128xf32>
    %49 = arith.maximumf %47, %48 : vector<256x128xf32>
    %50 = vector.shape_cast %49 : vector<256x128xf32> to vector<1x256x128xf32>
    %c0_51 = arith.constant 0 : index
    %c0_52 = arith.constant 0 : index
    %c0_53 = arith.constant 0 : index
    %51 = vector.load %arg8[%c0_51, %c0_52, %c0_53] : memref<1x256x128xf32, #tpu.memory_space<vmem>>, vector<1x256x128xf32>
    tpu.vector_store %arg8[%c0_51, %c0_52, %c0_53], %50 {strides = array<i32>} : memref<1x256x128xf32, #tpu.memory_space<vmem>>, vector<1x256x128xf32>,
    return
  }
  func.func @transform_0(%arg0: i32) -> (i32, i32, i32) {
    %c0_i32 = arith.constant 0 : i32
    %c0_i32_0 = arith.constant 0 : i32
    %c0_i32_1 = arith.constant 0 : i32
    return %arg0, %c0_i32, %c0_i32_0 : i32, i32, i32
  }
  func.func @transform_1(%arg0: i32) -> (i32, i32) {
    %c0_i32 = arith.constant 0 : i32
    %c0_i32_0 = arith.constant 0 : i32
    %c0_i32_1 = arith.constant 0 : i32
    return %c0_i32, %c0_i32_0 : i32, i32
  }
  func.func @transform_2(%arg0: i32) -> (i32, i32) {
    %c0_i32 = arith.constant 0 : i32
    %c0_i32_0 = arith.constant 0 : i32
    %c0_i32_1 = arith.constant 0 : i32
    return %c0_i32, %c0_i32_0 : i32, i32
  }
  func.func @transform_3(%arg0: i32) -> (i32, i32) {
    %c0_i32 = arith.constant 0 : i32
    %c0_i32_0 = arith.constant 0 : i32
    %c0_i32_1 = arith.constant 0 : i32
    return %c0_i32, %c0_i32_0 : i32, i32
  }
  func.func @transform_4(%arg0: i32) -> (i32, i32) {
    %c0_i32 = arith.constant 0 : i32
    %c0_i32_0 = arith.constant 0 : i32
    %c0_i32_1 = arith.constant 0 : i32
    return %c0_i32, %c0_i32_0 : i32, i32
  }
  func.func @transform_5(%arg0: i32) -> (i32, i32) {
    %c0_i32 = arith.constant 0 : i32
    %c0_i32_0 = arith.constant 0 : i32
    %c0_i32_1 = arith.constant 0 : i32
    return %c0_i32, %c0_i32_0 : i32, i32
  }
  func.func @transform_6(%arg0: i32) -> (i32, i32) {
    %c0_i32 = arith.constant 0 : i32
    %c0_i32_0 = arith.constant 0 : i32
    %c0_i32_1 = arith.constant 0 : i32
    return %c0_i32, %c0_i32_0 : i32, i32
  }
  func.func @transform_7(%arg0: i32) -> (i32, i32, i32) {
    %c0_i32 = arith.constant 0 : i32
    %c0_i32_0 = arith.constant 0 : i32
    %c0_i32_1 = arith.constant 0 : i32
    return %arg0, %c0_i32, %c0_i32_0 : i32, i32, i32
  }
}

</mosaic_0001>

<llo_original>
// kernel: tpu_custom_call.1
$region0: #{tpu_custom_call.1}
  #allocation0 [shape = 'u32[]', space=smem, size = 0x4, offset = 0x4, fixed_abs, tag = 'smem constant byte address 0x4 - core index']
  #allocation1 [shape = 'u32[72,128]{1,0:T(1,128)}', space=vmem, size = 0x9000, scoped, tag = 'internal scratch']
  #allocation2 [shape = 'f32[18,18,128]{2,1,0:T(8,128)}', space=vmem, size = 0x36000, scoped, tag = 'scratch operand']
  %s0 = inlined_call_operand.hbm [shape: f32[2,256,128], index: 0, kind: input, shape index: {}]
  %s1 = inlined_call_operand.hbm [shape: bf16[128,128], index: 1, kind: input, shape index: {}]
  %s2 = inlined_call_operand.vmem [shape: f32[1,128], index: 2, kind: input, shape index: {}]
  %s3 = inlined_call_operand.hbm [shape: bf16[1152,128], index: 3, kind: input, shape index: {}]
  %s4 = inlined_call_operand.vmem [shape: f32[1,128], index: 4, kind: input, shape index: {}]
  %s5 = inlined_call_operand.hbm [shape: bf16[128,128], index: 5, kind: input, shape index: {}]
  %s6 = inlined_call_operand.vmem [shape: f32[1,128], index: 6, kind: input, shape index: {}]
  %s7 = inlined_call_operand.hbm [shape: f32[2,256,128], index: 7, kind: output, shape index: {}]
  %s8 = sld [smem:[#allocation0]]
  $region77: #{tpu_custom_call.1} parent=0
    _
  %s10 = ssub.s32 1, %s8
  %s11 = scalar_select 0, %s10, %s8
  $region1: #{tpu_custom_call.1} parent=0
    #allocation3 [shape = 'u8[262144]{0}', space=vmem, size = 0x40000, scoped, tag = 'input window, operand 0']
    #allocation4 [shape = 's32[2]{0}', space=sflag, size = 0x8, scoped, tag = 'scoped memory for tpu_custom_call.1']
    #allocation5 [shape = 's32[2]{0}', space=sflag, size = 0x8, scoped, tag = 'scoped memory for tpu_custom_call.1']
    #allocation6 [shape = 'u8[32768]{0}', space=vmem, size = 0x8000, scoped, tag = 'input window, operand 1, single buffered']
    #allocation7 [shape = 's32[1]{0}', space=sflag, size = 0x4, scoped, tag = 'scoped memory for tpu_custom_call.1']
    #allocation8 [shape = 'u8[294912]{0}', space=vmem, size = 0x48000, scoped, tag = 'input window, operand 3, single buffered']
    #allocation9 [shape = 'u8[32768]{0}', space=vmem, size = 0x8000, scoped, tag = 'input window, operand 5, single buffered']
    #allocation10 [shape = 's32[1]{0}', space=sflag, size = 0x4, scoped, tag = 'scoped memory for tpu_custom_call.1']
    #allocation11 [shape = 'u8[262144]{0}', space=vmem, size = 0x40000, scoped, tag = 'output window, operand 0']
    %12 = vsyncpa [#allocation4], 0
    %s13 = scalar_lea.sflag [#allocation4], 1
    %14 = vsyncpa %s13, 0
    %15 = vsyncpa [#allocation7], 0
    %16 = vsyncpa [#allocation10], 0
    %17 = vsyncpa [#allocation5], 0
    %s18 = scalar_lea.sflag [#allocation5], 1
    %19 = vsyncpa %s18, 0
    loop: start=0, step=1, limit=4
    $region2: #{tpu_custom_call.1} parent=1 // loop_pre_header
      _
    $region3: #{tpu_custom_call.1} parent=1 // loop_header
      %s21 = sphi 0, %s25
      %p22 = scmp.ge.s32.totalorder %s21, 4
      %s31 = sphi 0, %s33
      %s34 = sphi 0, %s31
      %s35 = sphi 0, %s34
      %s51 = sphi 0, %s35
      %s55 = sphi 0, %s55
      %s57 = sphi 0, %s55
      %s58 = sphi 0, %s57
      %s72 = sphi 0, %s58
      %s76 = sphi 0, %s76
      %s78 = sphi 0, %s76
      %s79 = sphi 0, %s78
      %s93 = sphi 0, %s79
      %s97 = sphi 0, %s97
      %s99 = sphi 0, %s97
      %s100 = sphi 0, %s99
      %s114 = sphi 0, %s100
      %s118 = sphi 0, %s118
      %s120 = sphi 0, %s118
      %s121 = sphi 0, %s120
      %s135 = sphi 0, %s121
      %s139 = sphi 0, %s139
      %s141 = sphi 0, %s139
      %s142 = sphi 0, %s141
      %s156 = sphi 0, %s142
      %s160 = sphi 0, %s160
      %s162 = sphi 0, %s160
      %s163 = sphi 0, %s162
      %s177 = sphi 0, %s163
      %s183 = sphi 0, %s185
      %s186 = sphi 0, %s183
      %s187 = sphi 0, %s186
      %s203 = sphi 0, %s187
    $region4: #{tpu_custom_call.1} parent=1 // loop_header_branch
      %24 = sbr.rel (%p22) target = $region8
    $region5: #{tpu_custom_call.1} parent=1 // loop_body
      %s26 = ssub.s32 %s21, 1
      %s27 = ssub.s32 %s21, 2
      %s28 = sadd.s32 %s21, 1
      %s29 = ssub.s32 %s21, %s28
      %p30 = scmp.eq.s32.totalorder %s29, 0
      %s32 = sadd.s32 %s31, 1
      %s33 = scalar_select %p30, %s31, %s32
      %p36 = pneg %p30
      %p37 = scmp.eq.s32.totalorder %s21, 1
      %p38 = por %p36, %p37
      %p39 = scmp.ne.s32.totalorder %s31, %s34
      %p40 = scmp.eq.s32.totalorder %s21, 0
      %p41 = por %p39, %p40
      %p42 = scmp.ne.s32.totalorder %s31, %s34
      %p43 = scmp.eq.s32.totalorder %s26, 1
      %p44 = por %p42, %p43
      %p45 = scmp.ne.s32.totalorder %s34, %s35
      %p46 = scmp.eq.s32.totalorder %s26, 0
      %p47 = por %p45, %p46
      %p48 = scmp.ne.s32.totalorder %s34, %s35
      %p49 = scmp.eq.s32.totalorder %s27, 1
      %p50 = por %p48, %p49
      %p52 = scmp.ne.s32.totalorder %s35, %s51
      %p53 = scmp.eq.s32.totalorder %s27, 0
      %p54 = por %p52, %p53
      %s56 = sadd.s32 %s55, 1
      %p59 = scmp.eq.s32.totalorder %s21, 1
      %p60 = scmp.ne.s32.totalorder %s55, %s57
      %p61 = scmp.eq.s32.totalorder %s21, 0
      %p62 = por %p60, %p61
      %p63 = scmp.ne.s32.totalorder %s55, %s57
      %p64 = scmp.eq.s32.totalorder %s26, 1
      %p65 = por %p63, %p64
      %p66 = scmp.ne.s32.totalorder %s57, %s58
      %p67 = scmp.eq.s32.totalorder %s26, 0
      %p68 = por %p66, %p67
      %p69 = scmp.ne.s32.totalorder %s57, %s58
      %p70 = scmp.eq.s32.totalorder %s27, 1
      %p71 = por %p69, %p70
      %p73 = scmp.ne.s32.totalorder %s58, %s72
      %p74 = scmp.eq.s32.totalorder %s27, 0
      %p75 = por %p73, %p74
      %s77 = sadd.s32 %s76, 1
      %p80 = scmp.eq.s32.totalorder %s21, 1
      %p81 = scmp.ne.s32.totalorder %s76, %s78
      %p82 = scmp.eq.s32.totalorder %s21, 0
      %p83 = por %p81, %p82
      %p84 = scmp.ne.s32.totalorder %s76, %s78
      %p85 = scmp.eq.s32.totalorder %s26, 1
      %p86 = por %p84, %p85
      %p87 = scmp.ne.s32.totalorder %s78, %s79
      %p88 = scmp.eq.s32.totalorder %s26, 0
      %p89 = por %p87, %p88
      %p90 = scmp.ne.s32.totalorder %s78, %s79
      %p91 = scmp.eq.s32.totalorder %s27, 1
      %p92 = por %p90, %p91
      %p94 = scmp.ne.s32.totalorder %s79, %s93
      %p95 = scmp.eq.s32.totalorder %s27, 0
      %p96 = por %p94, %p95
      %s98 = sadd.s32 %s97, 1
      %p101 = scmp.eq.s32.totalorder %s21, 1
      %p102 = scmp.ne.s32.totalorder %s97, %s99
      %p103 = scmp.eq.s32.totalorder %s21, 0
      %p104 = por %p102, %p103
      %p105 = scmp.ne.s32.totalorder %s97, %s99
      %p106 = scmp.eq.s32.totalorder %s26, 1
      %p107 = por %p105, %p106
      %p108 = scmp.ne.s32.totalorder %s99, %s100
      %p109 = scmp.eq.s32.totalorder %s26, 0
      %p110 = por %p108, %p109
      %p111 = scmp.ne.s32.totalorder %s99, %s100
      %p112 = scmp.eq.s32.totalorder %s27, 1
      %p113 = por %p111, %p112
      %p115 = scmp.ne.s32.totalorder %s100, %s114
      %p116 = scmp.eq.s32.totalorder %s27, 0
      %p117 = por %p115, %p116
      %s119 = sadd.s32 %s118, 1
      %p122 = scmp.eq.s32.totalorder %s21, 1
      %p123 = scmp.ne.s32.totalorder %s118, %s120
      %p124 = scmp.eq.s32.totalorder %s21, 0
      %p125 = por %p123, %p124
      %p126 = scmp.ne.s32.totalorder %s118, %s120
      %p127 = scmp.eq.s32.totalorder %s26, 1
      %p128 = por %p126, %p127
      %p129 = scmp.ne.s32.totalorder %s120, %s121
      %p130 = scmp.eq.s32.totalorder %s26, 0
      %p131 = por %p129, %p130
      %p132 = scmp.ne.s32.totalorder %s120, %s121
      %p133 = scmp.eq.s32.totalorder %s27, 1
      %p134 = por %p132, %p133
      %p136 = scmp.ne.s32.totalorder %s121, %s135
      %p137 = scmp.eq.s32.totalorder %s27, 0
      %p138 = por %p136, %p137
      %s140 = sadd.s32 %s139, 1
      %p143 = scmp.eq.s32.totalorder %s21, 1
      %p144 = scmp.ne.s32.totalorder %s139, %s141
      %p145 = scmp.eq.s32.totalorder %s21, 0
      %p146 = por %p144, %p145
      %p147 = scmp.ne.s32.totalorder %s139, %s141
      %p148 = scmp.eq.s32.totalorder %s26, 1
      %p149 = por %p147, %p148
      %p150 = scmp.ne.s32.totalorder %s141, %s142
      %p151 = scmp.eq.s32.totalorder %s26, 0
      %p152 = por %p150, %p151
      %p153 = scmp.ne.s32.totalorder %s141, %s142
      %p154 = scmp.eq.s32.totalorder %s27, 1
      %p155 = por %p153, %p154
      %p157 = scmp.ne.s32.totalorder %s142, %s156
      %p158 = scmp.eq.s32.totalorder %s27, 0
      %p159 = por %p157, %p158
      %s161 = sadd.s32 %s160, 1
      %p164 = scmp.eq.s32.totalorder %s21, 1
      %p165 = scmp.ne.s32.totalorder %s160, %s162
      %p166 = scmp.eq.s32.totalorder %s21, 0
      %p167 = por %p165, %p166
      %p168 = scmp.ne.s32.totalorder %s160, %s162
      %p169 = scmp.eq.s32.totalorder %s26, 1
      %p170 = por %p168, %p169
      %p171 = scmp.ne.s32.totalorder %s162, %s163
      %p172 = scmp.eq.s32.totalorder %s26, 0
      %p173 = por %p171, %p172
      %p174 = scmp.ne.s32.totalorder %s162, %s163
      %p175 = scmp.eq.s32.totalorder %s27, 1
      %p176 = por %p174, %p175
      %p178 = scmp.ne.s32.totalorder %s163, %s177
      %p179 = scmp.eq.s32.totalorder %s27, 0
      %p180 = por %p178, %p179
      %s181 = ssub.s32 %s21, %s28
      %p182 = scmp.eq.s32.totalorder %s181, 0
      %s184 = sadd.s32 %s183, 1
      %s185 = scalar_select %p182, %s183, %s184
      %p188 = pneg %p182
      %p189 = scmp.eq.s32.totalorder %s21, 1
      %p190 = por %p188, %p189
      %p191 = scmp.ne.s32.totalorder %s183, %s186
      %p192 = scmp.eq.s32.totalorder %s21, 0
      %p193 = por %p191, %p192
      %p194 = scmp.ne.s32.totalorder %s183, %s186
      %p195 = scmp.eq.s32.totalorder %s26, 1
      %p196 = por %p194, %p195
      %p197 = scmp.ne.s32.totalorder %s186, %s187
      %p198 = scmp.eq.s32.totalorder %s26, 0
      %p199 = por %p197, %p198
      %p200 = scmp.ne.s32.totalorder %s186, %s187
      %p201 = scmp.eq.s32.totalorder %s27, 1
      %p202 = por %p200, %p201
      %p204 = scmp.ne.s32.totalorder %s187, %s203
      %p205 = scmp.eq.s32.totalorder %s27, 0
      %p206 = por %p204, %p205
      %p207 = scmp.le.s32.totalorder 1, %s21
      %p208 = scmp.lt.s32.totalorder %s21, 3
      %p209 = pnand %p207, %p208
      %p210 = pneg %p209
      // Predicated region
      $region9: #{tpu_custom_call.1} parent=5 // pred_check
        _
      $region10: #{tpu_custom_call.1} parent=5 // pred_check_branch
        %212 = sbr.rel (%p209) target = $region12
      $region11: #{tpu_custom_call.1} parent=5 // pred_region
        %s213 = ssub.s32 %s21, 1
        // Predicated region
        $region13: #{tpu_custom_call.1} parent=11 // pred_check
          %p214 = pneg %p68
        $region14: #{tpu_custom_call.1} parent=11 // pred_check_branch
          %216 = sbr.rel (%p214) target = $region16
        $region15: #{tpu_custom_call.1} parent=11 // pred_region
          %218 = vsyncadd [#allocation7], 0
          %s219 = sshll.u32 %s1, 4
          %s220 = int_to_ptr.hbm [resolvable:$true] %s219
          %s221 = sshll.u32 [#allocation6], 4
          %s222 = int_to_ptr.vmem [resolvable:$true] %s221
          %227 = dma.hbm_to_vmem [thread:$0]  %s220, 1024, %s222, [#allocation7], 64, 64, 4
        $region16: #{tpu_custom_call.1} parent=11 // pred_fallthru
          _
        // Predicated region
        $region17: #{tpu_custom_call.1} parent=11 // pred_check
          %p228 = pneg %p89
        $region18: #{tpu_custom_call.1} parent=11 // pred_check_branch
          %230 = sbr.rel (%p228) target = $region20
        $region19: #{tpu_custom_call.1} parent=11 // pred_region
          _
        $region20: #{tpu_custom_call.1} parent=11 // pred_fallthru
          _
        // Predicated region
        $region21: #{tpu_custom_call.1} parent=11 // pred_check
          %p231 = pneg %p110
        $region22: #{tpu_custom_call.1} parent=11 // pred_check_branch
          %233 = sbr.rel (%p231) target = $region24
        $region23: #{tpu_custom_call.1} parent=11 // pred_region
          %235 = vsyncadd [#allocation7], 0
          %s236 = sshll.u32 %s3, 4
          %s237 = int_to_ptr.hbm [resolvable:$true] %s236
          %s238 = sshll.u32 [#allocation8], 4
          %s239 = int_to_ptr.vmem [resolvable:$true] %s238
          %244 = dma.hbm_to_vmem [thread:$0]  %s237, 9216, %s239, [#allocation7], 64, 64, 4
        $region24: #{tpu_custom_call.1} parent=11 // pred_fallthru
          _
        // Predicated region
        $region25: #{tpu_custom_call.1} parent=11 // pred_check
          %p245 = pneg %p131
        $region26: #{tpu_custom_call.1} parent=11 // pred_check_branch
          %247 = sbr.rel (%p245) target = $region28
        $region27: #{tpu_custom_call.1} parent=11 // pred_region
          _
        $region28: #{tpu_custom_call.1} parent=11 // pred_fallthru
          _
        // Predicated region
        $region29: #{tpu_custom_call.1} parent=11 // pred_check
          %p248 = pneg %p152
        $region30: #{tpu_custom_call.1} parent=11 // pred_check_branch
          %250 = sbr.rel (%p248) target = $region32
        $region31: #{tpu_custom_call.1} parent=11 // pred_region
          %252 = vsyncadd [#allocation10], 0
          %s253 = sshll.u32 %s5, 4
          %s254 = int_to_ptr.hbm [resolvable:$true] %s253
          %s255 = sshll.u32 [#allocation9], 4
          %s256 = int_to_ptr.vmem [resolvable:$true] %s255
          %261 = dma.hbm_to_vmem [thread:$0]  %s254, 1024, %s256, [#allocation10], 64, 64, 4
        $region32: #{tpu_custom_call.1} parent=11 // pred_fallthru
          _
        // Predicated region
        $region33: #{tpu_custom_call.1} parent=11 // pred_check
          %p262 = pneg %p173
        $region34: #{tpu_custom_call.1} parent=11 // pred_check_branch
          %264 = sbr.rel (%p262) target = $region36
        $region35: #{tpu_custom_call.1} parent=11 // pred_region
          _
        $region36: #{tpu_custom_call.1} parent=11 // pred_fallthru
          _
      $region12: #{tpu_custom_call.1} parent=5 // pred_fallthru
        _
      %p265 = scmp.lt.s32.totalorder %s21, 2
      // Predicated region
      $region37: #{tpu_custom_call.1} parent=5 // pred_check
        %p266 = pneg %p265
      $region38: #{tpu_custom_call.1} parent=5 // pred_check_branch
        %268 = sbr.rel (%p266) target = $region40
      $region39: #{tpu_custom_call.1} parent=5 // pred_region
        // Predicated region
        $region41: #{tpu_custom_call.1} parent=39 // pred_check
          %p269 = pneg %p41
        $region42: #{tpu_custom_call.1} parent=39 // pred_check_branch
          %271 = sbr.rel (%p269) target = $region44
        $region43: #{tpu_custom_call.1} parent=39 // pred_region
          %s272 = sand.u32 %s31, 1
          %s273 = scalar_lea.sflag [#allocation4], %s272
          %s274 = sand.u32 %s31, 1
          %s275 = smul.addr %s274, 256
          %s276 = scalar_lea.vmem [#allocation3], %s275
          %278 = vsyncadd %s273, 0
          %s279 = smul.addr %s21, 32
          %s280 = smul.addr %s279, 8
          %s281 = scalar_lea.hbm %s0, %s280
          %s282 = sshll.u32 %s281, 4
          %s283 = int_to_ptr.hbm [resolvable:$true] %s282
          %s284 = sshll.u32 %s276, 4
          %s285 = int_to_ptr.vmem [resolvable:$true] %s284
          %290 = dma.hbm_to_vmem [thread:$0]  %s283, 4096, %s285, %s273, 128, 128, 8
        $region44: #{tpu_custom_call.1} parent=39 // pred_fallthru
          _
      $region40: #{tpu_custom_call.1} parent=5 // pred_fallthru
        _
      %p291 = scmp.le.s32.totalorder 1, %s21
      %p292 = scmp.lt.s32.totalorder %s21, 3
      %p293 = pnand %p291, %p292
      %p294 = pneg %p293
      // Predicated region
      $region45: #{tpu_custom_call.1} parent=5 // pred_check
        _
      $region46: #{tpu_custom_call.1} parent=5 // pred_check_branch
        %296 = sbr.rel (%p293) target = $region48
      $region47: #{tpu_custom_call.1} parent=5 // pred_region
        %s297 = ssub.s32 %s21, 1
        %s298 = sand.u32 %s34, 1
        %s299 = scalar_lea.sflag [#allocation4], %s298
        %s300 = sand.u32 %s34, 1
        %s301 = smul.addr %s300, 256
        %s302 = scalar_lea.vmem [#allocation3], %s301
        // Predicated region
        $region49: #{tpu_custom_call.1} parent=47 // pred_check
          %p303 = pneg %p47
        $region50: #{tpu_custom_call.1} parent=47 // pred_check_branch
          %305 = sbr.rel (%p303) target = $region52
        $region51: #{tpu_custom_call.1} parent=47 // pred_region
          %307 = dma.done %s299, 4096
        $region52: #{tpu_custom_call.1} parent=47 // pred_fallthru
          _
        // Predicated region
        $region53: #{tpu_custom_call.1} parent=47 // pred_check
          %p308 = pneg %p68
        $region54: #{tpu_custom_call.1} parent=47 // pred_check_branch
          %310 = sbr.rel (%p308) target = $region56
        $region55: #{tpu_custom_call.1} parent=47 // pred_region
          %312 = dma.done [#allocation7], 1024
        $region56: #{tpu_custom_call.1} parent=47 // pred_fallthru
          _
        // Predicated region
        $region57: #{tpu_custom_call.1} parent=47 // pred_check
          %p313 = pneg %p110
        $region58: #{tpu_custom_call.1} parent=47 // pred_check_branch
          %315 = sbr.rel (%p313) target = $region60
        $region59: #{tpu_custom_call.1} parent=47 // pred_region
          %317 = dma.done [#allocation7], 9216
        $region60: #{tpu_custom_call.1} parent=47 // pred_fallthru
          _
        // Predicated region
        $region61: #{tpu_custom_call.1} parent=47 // pred_check
          %p318 = pneg %p152
        $region62: #{tpu_custom_call.1} parent=47 // pred_check_branch
          %320 = sbr.rel (%p318) target = $region64
        $region63: #{tpu_custom_call.1} parent=47 // pred_region
          %322 = dma.done [#allocation10], 1024
        $region64: #{tpu_custom_call.1} parent=47 // pred_fallthru
          _
        %s323 = sand.u32 %s34, 1
        %s324 = scalar_lea.sflag [#allocation4], %s323
        %s325 = sand.u32 %s34, 1
        %s326 = smul.addr %s325, 256
        %s327 = scalar_lea.vmem [#allocation3], %s326
        %p328 = pneg %p47
        %p329 = pneg %p44
        %p330 = pneg %p68
        %p331 = pneg %p65
        %p332 = pneg %p89
        %p333 = pneg %p86
        %p334 = pneg %p110
        %p335 = pneg %p107
        %p336 = pneg %p131
        %p337 = pneg %p128
        %p338 = pneg %p152
        %p339 = pneg %p149
        %p340 = pneg %p173
        %p341 = pneg %p170
        %p342 = pneg %p199
        %p343 = pneg %p196
        %s344 = sand.u32 %s186, 1
        %s345 = scalar_lea.sflag [#allocation5], %s344
        %s346 = sand.u32 %s186, 1
        %s347 = smul.addr %s346, 256
        %s348 = scalar_lea.vmem [#allocation11], %s347
        %v349 = vld [vmem:[%s302] sm:$0xff]
        %v350 = vld [vmem:[%s302 + $0x8] sm:$0xff]
        %v351 = vld [vmem:[%s302 + $0x10] sm:$0xff]
        %v352 = vld [vmem:[%s302 + $0x18] sm:$0xff]
        %v353 = vld [vmem:[%s302 + $0x20] sm:$0xff]
        %v354 = vld [vmem:[%s302 + $0x28] sm:$0xff]
        %v355 = vld [vmem:[%s302 + $0x30] sm:$0xff]
        %v356 = vld [vmem:[%s302 + $0x38] sm:$0xff]
        %v357 = vld [vmem:[%s302 + $0x40] sm:$0xff]
        %v358 = vld [vmem:[%s302 + $0x48] sm:$0xff]
        %v359 = vld [vmem:[%s302 + $0x50] sm:$0xff]
        %v360 = vld [vmem:[%s302 + $0x58] sm:$0xff]
        %v361 = vld [vmem:[%s302 + $0x60] sm:$0xff]
        %v362 = vld [vmem:[%s302 + $0x68] sm:$0xff]
        %v363 = vld [vmem:[%s302 + $0x70] sm:$0xff]
        %v364 = vld [vmem:[%s302 + $0x78] sm:$0xff]
        %v365 = vld [vmem:[%s302 + $0x80] sm:$0xff]
        %v366 = vld [vmem:[%s302 + $0x88] sm:$0xff]
        %v367 = vld [vmem:[%s302 + $0x90] sm:$0xff]
        %v368 = vld [vmem:[%s302 + $0x98] sm:$0xff]
        %v369 = vld [vmem:[%s302 + $0xa0] sm:$0xff]
        %v370 = vld [vmem:[%s302 + $0xa8] sm:$0xff]
        %v371 = vld [vmem:[%s302 + $0xb0] sm:$0xff]
        %v372 = vld [vmem:[%s302 + $0xb8] sm:$0xff]
        %v373 = vld [vmem:[%s302 + $0xc0] sm:$0xff]
        %v374 = vld [vmem:[%s302 + $0xc8] sm:$0xff]
        %v375 = vld [vmem:[%s302 + $0xd0] sm:$0xff]
        %v376 = vld [vmem:[%s302 + $0xd8] sm:$0xff]
        %v377 = vld [vmem:[%s302 + $0xe0] sm:$0xff]
        %v378 = vld [vmem:[%s302 + $0xe8] sm:$0xff]
        %v379 = vld [vmem:[%s302 + $0xf0] sm:$0xff]
        %v380 = vld [vmem:[%s302 + $0xf8] sm:$0xff]
        %v381 = vpack.c.bf16 %v350, %v349
        %v382 = vpack.c.bf16 %v352, %v351
        %v383 = vpack.c.bf16 %v354, %v353
        %v384 = vpack.c.bf16 %v356, %v355
        %v385 = vpack.c.bf16 %v358, %v357
        %v386 = vpack.c.bf16 %v360, %v359
        %v387 = vpack.c.bf16 %v362, %v361
        %v388 = vpack.c.bf16 %v364, %v363
        %v389 = vpack.c.bf16 %v366, %v365
        %v390 = vpack.c.bf16 %v368, %v367
        %v391 = vpack.c.bf16 %v370, %v369
        %v392 = vpack.c.bf16 %v372, %v371
        %v393 = vpack.c.bf16 %v374, %v373
        %v394 = vpack.c.bf16 %v376, %v375
        %v395 = vpack.c.bf16 %v378, %v377
        %v396 = vpack.c.bf16 %v380, %v379
        %v397 = vld [vmem:[#allocation6] sm:$0xf]
        %v398 = vld [vmem:[#allocation6 + $0x4] sm:$0xf]
        %v399 = vld [vmem:[#allocation6 + $0x8] sm:$0xf]
        %v400 = vld [vmem:[#allocation6 + $0xc] sm:$0xf]
        %v401 = vld [vmem:[#allocation6 + $0x10] sm:$0xf]
        %v402 = vld [vmem:[#allocation6 + $0x14] sm:$0xf]
        %v403 = vld [vmem:[#allocation6 + $0x18] sm:$0xf]
        %v404 = vld [vmem:[#allocation6 + $0x1c] sm:$0xf]
        %v405 = vld [vmem:[#allocation6 + $0x20] sm:$0xf]
        %v406 = vld [vmem:[#allocation6 + $0x24] sm:$0xf]
        %v407 = vld [vmem:[#allocation6 + $0x28] sm:$0xf]
        %v408 = vld [vmem:[#allocation6 + $0x2c] sm:$0xf]
        %v409 = vld [vmem:[#allocation6 + $0x30] sm:$0xf]
        %v410 = vld [vmem:[#allocation6 + $0x34] sm:$0xf]
        %v411 = vld [vmem:[#allocation6 + $0x38] sm:$0xf]
        %v412 = vld [vmem:[#allocation6 + $0x3c] sm:$0xf]
        %v413 = vld [vmem:[%s2] sm:$0x1]
        %v415 = vperm.slane %v413, 0
        %v433 = vunpack.c.l.b16 %v397
        %v434 = vunpack.c.l.b16 %v398
        %v435 = vunpack.c.l.b16 %v399
        %v436 = vunpack.c.l.b16 %v400
        %v437 = vunpack.c.l.b16 %v401
        %v438 = vunpack.c.l.b16 %v402
        %v439 = vunpack.c.l.b16 %v403
        %v440 = vunpack.c.l.b16 %v404
        %v441 = vunpack.c.l.b16 %v405
        %v442 = vunpack.c.l.b16 %v406
        %v443 = vunpack.c.l.b16 %v407
        %v444 = vunpack.c.l.b16 %v408
        %v445 = vunpack.c.l.b16 %v409
        %v446 = vunpack.c.l.b16 %v410
        %v447 = vunpack.c.l.b16 %v411
        %v448 = vunpack.c.l.b16 %v412
        %v449 = vpack.c.b16 %v434, %v433
        %v450 = vpack.c.b16 %v436, %v435
        %v451 = vpack.c.b16 %v438, %v437
        %v452 = vpack.c.b16 %v440, %v439
        %v453 = vpack.c.b16 %v442, %v441
        %v454 = vpack.c.b16 %v444, %v443
        %v455 = vpack.c.b16 %v446, %v445
        %v456 = vpack.c.b16 %v448, %v447
        %465 = vmatpush.bf16.msra.mxu0 %v456
        %466 = vmatpush.bf16.msra.mxu0 %v455
        %467 = vmatpush.bf16.msra.mxu0 %v454
        %468 = vmatpush.bf16.msra.mxu0 %v453
        %469 = vmatpush.bf16.msra.mxu0 %v452
        %470 = vmatpush.bf16.msra.mxu0 %v451
        %471 = vmatpush.bf16.msra.mxu0 %v450
        %472 = vmatpush.bf16.msra.mxu0 %v449
        %473 = vmatmul.bf16.gmra.mxu0 %v381
        %v474 = vpop.f32.mrf.mxu0
        %v475 = vadd.f32 %v415, %v474
        %v476 = vpop.f32.mrf.mxu0
        %v477 = vadd.f32 %v415, %v476
        %478 = vmatmul.bf16.gmra.mxu0 %v382
        %v479 = vpop.f32.mrf.mxu0
        %v480 = vadd.f32 %v415, %v479
        %v481 = vpop.f32.mrf.mxu0
        %v482 = vadd.f32 %v415, %v481
        %483 = vmatmul.bf16.gmra.mxu0 %v383
        %v484 = vpop.f32.mrf.mxu0
        %v485 = vadd.f32 %v415, %v484
        %v486 = vpop.f32.mrf.mxu0
        %v487 = vadd.f32 %v415, %v486
        %488 = vmatmul.bf16.gmra.mxu0 %v384
        %v489 = vpop.f32.mrf.mxu0
        %v490 = vadd.f32 %v415, %v489
        %v491 = vpop.f32.mrf.mxu0
        %v492 = vadd.f32 %v415, %v491
        %493 = vmatmul.bf16.gmra.mxu0 %v385
        %v494 = vpop.f32.mrf.mxu0
        %v495 = vadd.f32 %v415, %v494
        %v496 = vpop.f32.mrf.mxu0
        %v497 = vadd.f32 %v415, %v496
        %498 = vmatmul.bf16.gmra.mxu0 %v386
        %v499 = vpop.f32.mrf.mxu0
        %v500 = vadd.f32 %v415, %v499
        %v501 = vpop.f32.mrf.mxu0
        %v502 = vadd.f32 %v415, %v501
        %503 = vmatmul.bf16.gmra.mxu0 %v387
        %v504 = vpop.f32.mrf.mxu0
        %v505 = vadd.f32 %v415, %v504
        %v506 = vpop.f32.mrf.mxu0
        %v507 = vadd.f32 %v415, %v506
        %508 = vmatmul.bf16.gmra.mxu0 %v388
        %v509 = vpop.f32.mrf.mxu0
        %v510 = vadd.f32 %v415, %v509
        %v511 = vpop.f32.mrf.mxu0
        %v512 = vadd.f32 %v415, %v511
        %513 = vmatmul.bf16.gmra.mxu0 %v389
        %v514 = vpop.f32.mrf.mxu0
        %v515 = vadd.f32 %v415, %v514
        %v516 = vpop.f32.mrf.mxu0
        %v517 = vadd.f32 %v415, %v516
        %518 = vmatmul.bf16.gmra.mxu0 %v390
        %v519 = vpop.f32.mrf.mxu0
        %v520 = vadd.f32 %v415, %v519
        %v521 = vpop.f32.mrf.mxu0
        %v522 = vadd.f32 %v415, %v521
        %523 = vmatmul.bf16.gmra.mxu0 %v391
        %v524 = vpop.f32.mrf.mxu0
        %v525 = vadd.f32 %v415, %v524
        %v526 = vpop.f32.mrf.mxu0
        %v527 = vadd.f32 %v415, %v526
        %528 = vmatmul.bf16.gmra.mxu0 %v392
        %v529 = vpop.f32.mrf.mxu0
        %v530 = vadd.f32 %v415, %v529
        %v531 = vpop.f32.mrf.mxu0
        %v532 = vadd.f32 %v415, %v531
        %533 = vmatmul.bf16.gmra.mxu0 %v393
        %v534 = vpop.f32.mrf.mxu0
        %v535 = vadd.f32 %v415, %v534
        %v536 = vpop.f32.mrf.mxu0
        %v537 = vadd.f32 %v415, %v536
        %538 = vmatmul.bf16.gmra.mxu0 %v394
        %v539 = vpop.f32.mrf.mxu0
        %v540 = vadd.f32 %v415, %v539
        %v541 = vpop.f32.mrf.mxu0
        %v542 = vadd.f32 %v415, %v541
        %543 = vmatmul.bf16.gmra.mxu0 %v395
        %v544 = vpop.f32.mrf.mxu0
        %v545 = vadd.f32 %v415, %v544
        %v546 = vpop.f32.mrf.mxu0
        %v547 = vadd.f32 %v415, %v546
        %548 = vmatmul.bf16.gmra.mxu0 %v396
        %v549 = vpop.f32.mrf.mxu0
        %v550 = vadd.f32 %v415, %v549
        %v551 = vpop.f32.mrf.mxu0
        %v552 = vadd.f32 %v415, %v551
        %553 = vdwg.mxu0
        %v554 = vmax.f32 %v475, 0.0
        %v555 = vmax.f32 %v477, 0.0
        %v556 = vmax.f32 %v480, 0.0
        %v557 = vmax.f32 %v482, 0.0
        %v558 = vmax.f32 %v485, 0.0
        %v559 = vmax.f32 %v487, 0.0
        %v560 = vmax.f32 %v490, 0.0
        %v561 = vmax.f32 %v492, 0.0
        %v562 = vmax.f32 %v495, 0.0
        %v563 = vmax.f32 %v497, 0.0
        %v564 = vmax.f32 %v500, 0.0
        %v565 = vmax.f32 %v502, 0.0
        %v566 = vmax.f32 %v505, 0.0
        %v567 = vmax.f32 %v507, 0.0
        %v568 = vmax.f32 %v510, 0.0
        %v569 = vmax.f32 %v512, 0.0
        %v570 = vmax.f32 %v515, 0.0
        %v571 = vmax.f32 %v517, 0.0
        %v572 = vmax.f32 %v520, 0.0
        %v573 = vmax.f32 %v522, 0.0
        %v574 = vmax.f32 %v525, 0.0
        %v575 = vmax.f32 %v527, 0.0
        %v576 = vmax.f32 %v530, 0.0
        %v577 = vmax.f32 %v532, 0.0
        %v578 = vmax.f32 %v535, 0.0
        %v579 = vmax.f32 %v537, 0.0
        %v580 = vmax.f32 %v540, 0.0
        %v581 = vmax.f32 %v542, 0.0
        %v582 = vmax.f32 %v545, 0.0
        %v583 = vmax.f32 %v547, 0.0
        %v584 = vmax.f32 %v550, 0.0
        %v585 = vmax.f32 %v552, 0.0
        %586 = vst [vmem:[#allocation2] sm:$0xff] 0.0
        %587 = vst [vmem:[#allocation2 + $0x8] sm:$0xff] 0.0
        %588 = vst [vmem:[#allocation2 + $0x10] sm:$0x3] 0.0
        %589 = vst [vmem:[#allocation2 + $0x18] sm:$0xff] 0.0
        %590 = vst [vmem:[#allocation2 + $0x20] sm:$0xff] 0.0
        %591 = vst [vmem:[#allocation2 + $0x28] sm:$0x3] 0.0
        %592 = vst [vmem:[#allocation2 + $0x30] sm:$0xff] 0.0
        %593 = vst [vmem:[#allocation2 + $0x38] sm:$0xff] 0.0
        %594 = vst [vmem:[#allocation2 + $0x40] sm:$0x3] 0.0
        %595 = vst [vmem:[#allocation2 + $0x48] sm:$0xff] 0.0
        %596 = vst [vmem:[#allocation2 + $0x50] sm:$0xff] 0.0
        %597 = vst [vmem:[#allocation2 + $0x58] sm:$0x3] 0.0
        %598 = vst [vmem:[#allocation2 + $0x60] sm:$0xff] 0.0
        %599 = vst [vmem:[#allocation2 + $0x68] sm:$0xff] 0.0
        %600 = vst [vmem:[#allocation2 + $0x70] sm:$0x3] 0.0
        %601 = vst [vmem:[#allocation2 + $0x78] sm:$0xff] 0.0
        %602 = vst [vmem:[#allocation2 + $0x80] sm:$0xff] 0.0
        %603 = vst [vmem:[#allocation2 + $0x88] sm:$0x3] 0.0
        %604 = vst [vmem:[#allocation2 + $0x90] sm:$0xff] 0.0
        %605 = vst [vmem:[#allocation2 + $0x98] sm:$0xff] 0.0
        %606 = vst [vmem:[#allocation2 + $0xa0] sm:$0x3] 0.0
        %607 = vst [vmem:[#allocation2 + $0xa8] sm:$0xff] 0.0
        %608 = vst [vmem:[#allocation2 + $0xb0] sm:$0xff] 0.0
        %609 = vst [vmem:[#allocation2 + $0xb8] sm:$0x3] 0.0
        %610 = vst [vmem:[#allocation2 + $0xc0] sm:$0xff] 0.0
        %611 = vst [vmem:[#allocation2 + $0xc8] sm:$0xff] 0.0
        %612 = vst [vmem:[#allocation2 + $0xd0] sm:$0x3] 0.0
        %613 = vst [vmem:[#allocation2 + $0xd8] sm:$0xff] 0.0
        %614 = vst [vmem:[#allocation2 + $0xe0] sm:$0xff] 0.0
        %615 = vst [vmem:[#allocation2 + $0xe8] sm:$0x3] 0.0
        %616 = vst [vmem:[#allocation2 + $0xf0] sm:$0xff] 0.0
        %617 = vst [vmem:[#allocation2 + $0xf8] sm:$0xff] 0.0
        %618 = vst [vmem:[#allocation2 + $0x100] sm:$0x3] 0.0
        %619 = vst [vmem:[#allocation2 + $0x108] sm:$0xff] 0.0
        %620 = vst [vmem:[#allocation2 + $0x110] sm:$0xff] 0.0
        %621 = vst [vmem:[#allocation2 + $0x118] sm:$0x3] 0.0
        %622 = vst [vmem:[#allocation2 + $0x120] sm:$0xff] 0.0
        %623 = vst [vmem:[#allocation2 + $0x128] sm:$0xff] 0.0
        %624 = vst [vmem:[#allocation2 + $0x130] sm:$0x3] 0.0
        %625 = vst [vmem:[#allocation2 + $0x138] sm:$0xff] 0.0
        %626 = vst [vmem:[#allocation2 + $0x140] sm:$0xff] 0.0
        %627 = vst [vmem:[#allocation2 + $0x148] sm:$0x3] 0.0
        %628 = vst [vmem:[#allocation2 + $0x150] sm:$0xff] 0.0
        %629 = vst [vmem:[#allocation2 + $0x158] sm:$0xff] 0.0
        %630 = vst [vmem:[#allocation2 + $0x160] sm:$0x3] 0.0
        %631 = vst [vmem:[#allocation2 + $0x168] sm:$0xff] 0.0
        %632 = vst [vmem:[#allocation2 + $0x170] sm:$0xff] 0.0
        %633 = vst [vmem:[#allocation2 + $0x178] sm:$0x3] 0.0
        %634 = vst [vmem:[#allocation2 + $0x180] sm:$0xff] 0.0
        %635 = vst [vmem:[#allocation2 + $0x188] sm:$0xff] 0.0
        %636 = vst [vmem:[#allocation2 + $0x190] sm:$0x3] 0.0
        %637 = vst [vmem:[#allocation2 + $0x198] sm:$0xff] 0.0
        %638 = vst [vmem:[#allocation2 + $0x1a0] sm:$0xff] 0.0
        %639 = vst [vmem:[#allocation2 + $0x1a8] sm:$0x3] 0.0
        %s640 = scalar_lea.vmem [#allocation2], 24
        %641 = vst [vmem:[%s640 + $0x1] sm:$0xff] %v554
        %642 = vst [vmem:[%s640 + $0x9] sm:$0xff] %v555
        %643 = vst [vmem:[%s640 + $0x19] sm:$0xff] %v556
        %644 = vst [vmem:[%s640 + $0x21] sm:$0xff] %v557
        %645 = vst [vmem:[%s640 + $0x31] sm:$0xff] %v558
        %646 = vst [vmem:[%s640 + $0x39] sm:$0xff] %v559
        %647 = vst [vmem:[%s640 + $0x49] sm:$0xff] %v560
        %648 = vst [vmem:[%s640 + $0x51] sm:$0xff] %v561
        %649 = vst [vmem:[%s640 + $0x61] sm:$0xff] %v562
        %650 = vst [vmem:[%s640 + $0x69] sm:$0xff] %v563
        %651 = vst [vmem:[%s640 + $0x79] sm:$0xff] %v564
        %652 = vst [vmem:[%s640 + $0x81] sm:$0xff] %v565
        %653 = vst [vmem:[%s640 + $0x91] sm:$0xff] %v566
        %654 = vst [vmem:[%s640 + $0x99] sm:$0xff] %v567
        %655 = vst [vmem:[%s640 + $0xa9] sm:$0xff] %v568
        %656 = vst [vmem:[%s640 + $0xb1] sm:$0xff] %v569
        %657 = vst [vmem:[%s640 + $0xc1] sm:$0xff] %v570
        %658 = vst [vmem:[%s640 + $0xc9] sm:$0xff] %v571
        %659 = vst [vmem:[%s640 + $0xd9] sm:$0xff] %v572
        %660 = vst [vmem:[%s640 + $0xe1] sm:$0xff] %v573
        %661 = vst [vmem:[%s640 + $0xf1] sm:$0xff] %v574
        %662 = vst [vmem:[%s640 + $0xf9] sm:$0xff] %v575
        %663 = vst [vmem:[%s640 + $0x109] sm:$0xff] %v576
        %664 = vst [vmem:[%s640 + $0x111] sm:$0xff] %v577
        %665 = vst [vmem:[%s640 + $0x121] sm:$0xff] %v578
        %666 = vst [vmem:[%s640 + $0x129] sm:$0xff] %v579
        %667 = vst [vmem:[%s640 + $0x139] sm:$0xff] %v580
        %668 = vst [vmem:[%s640 + $0x141] sm:$0xff] %v581
        %669 = vst [vmem:[%s640 + $0x151] sm:$0xff] %v582
        %670 = vst [vmem:[%s640 + $0x159] sm:$0xff] %v583
        %671 = vst [vmem:[%s640 + $0x169] sm:$0xff] %v584
        %672 = vst [vmem:[%s640 + $0x171] sm:$0xff] %v585
        %v673 = vld [vmem:[#allocation2] sm:$0xff]
        %v674 = vld [vmem:[#allocation2 + $0x8] sm:$0xff]
        %v675 = vld [vmem:[#allocation2 + $0x18] sm:$0xff]
        %v676 = vld [vmem:[#allocation2 + $0x20] sm:$0xff]
        %v677 = vld [vmem:[#allocation2 + $0x30] sm:$0xff]
        %v678 = vld [vmem:[#allocation2 + $0x38] sm:$0xff]
        %v679 = vld [vmem:[#allocation2 + $0x48] sm:$0xff]
        %v680 = vld [vmem:[#allocation2 + $0x50] sm:$0xff]
        %v681 = vld [vmem:[#allocation2 + $0x60] sm:$0xff]
        %v682 = vld [vmem:[#allocation2 + $0x68] sm:$0xff]
        %v683 = vld [vmem:[#allocation2 + $0x78] sm:$0xff]
        %v684 = vld [vmem:[#allocation2 + $0x80] sm:$0xff]
        %v685 = vld [vmem:[#allocation2 + $0x90] sm:$0xff]
        %v686 = vld [vmem:[#allocation2 + $0x98] sm:$0xff]
        %v687 = vld [vmem:[#allocation2 + $0xa8] sm:$0xff]
        %v688 = vld [vmem:[#allocation2 + $0xb0] sm:$0xff]
        %v689 = vld [vmem:[#allocation2 + $0xc0] sm:$0xff]
        %v690 = vld [vmem:[#allocation2 + $0xc8] sm:$0xff]
        %v691 = vld [vmem:[#allocation2 + $0xd8] sm:$0xff]
        %v692 = vld [vmem:[#allocation2 + $0xe0] sm:$0xff]
        %v693 = vld [vmem:[#allocation2 + $0xf0] sm:$0xff]
        %v694 = vld [vmem:[#allocation2 + $0xf8] sm:$0xff]
        %v695 = vld [vmem:[#allocation2 + $0x108] sm:$0xff]
        %v696 = vld [vmem:[#allocation2 + $0x110] sm:$0xff]
        %v697 = vld [vmem:[#allocation2 + $0x120] sm:$0xff]
        %v698 = vld [vmem:[#allocation2 + $0x128] sm:$0xff]
        %v699 = vld [vmem:[#allocation2 + $0x138] sm:$0xff]
        %v700 = vld [vmem:[#allocation2 + $0x140] sm:$0xff]
        %v701 = vld [vmem:[#allocation2 + $0x150] sm:$0xff]
        %v702 = vld [vmem:[#allocation2 + $0x158] sm:$0xff]
        %v703 = vld [vmem:[#allocation2 + $0x168] sm:$0xff]
        %v704 = vld [vmem:[#allocation2 + $0x170] sm:$0xff]
        %v705 = vld [vmem:[#allocation2 + $0x1] sm:$0xff]
        %v706 = vld [vmem:[#allocation2 + $0x9] sm:$0xff]
        %v707 = vld [vmem:[#allocation2 + $0x19] sm:$0xff]
        %v708 = vld [vmem:[#allocation2 + $0x21] sm:$0xff]
        %v709 = vld [vmem:[#allocation2 + $0x31] sm:$0xff]
        %v710 = vld [vmem:[#allocation2 + $0x39] sm:$0xff]
        %v711 = vld [vmem:[#allocation2 + $0x49] sm:$0xff]
        %v712 = vld [vmem:[#allocation2 + $0x51] sm:$0xff]
        %v713 = vld [vmem:[#allocation2 + $0x61] sm:$0xff]
        %v714 = vld [vmem:[#allocation2 + $0x69] sm:$0xff]
        %v715 = vld [vmem:[#allocation2 + $0x79] sm:$0xff]
        %v716 = vld [vmem:[#allocation2 + $0x81] sm:$0xff]
        %v717 = vld [vmem:[#allocation2 + $0x91] sm:$0xff]
        %v718 = vld [vmem:[#allocation2 + $0x99] sm:$0xff]
        %v719 = vld [vmem:[#allocation2 + $0xa9] sm:$0xff]
        %v720 = vld [vmem:[#allocation2 + $0xb1] sm:$0xff]
        %v721 = vld [vmem:[#allocation2 + $0xc1] sm:$0xff]
        %v722 = vld [vmem:[#allocation2 + $0xc9] sm:$0xff]
        %v723 = vld [vmem:[#allocation2 + $0xd9] sm:$0xff]
        %v724 = vld [vmem:[#allocation2 + $0xe1] sm:$0xff]
        %v725 = vld [vmem:[#allocation2 + $0xf1] sm:$0xff]
        %v726 = vld [vmem:[#allocation2 + $0xf9] sm:$0xff]
        %v727 = vld [vmem:[#allocation2 + $0x109] sm:$0xff]
        %v728 = vld [vmem:[#allocation2 + $0x111] sm:$0xff]
        %v729 = vld [vmem:[#allocation2 + $0x121] sm:$0xff]
        %v730 = vld [vmem:[#allocation2 + $0x129] sm:$0xff]
        %v731 = vld [vmem:[#allocation2 + $0x139] sm:$0xff]
        %v732 = vld [vmem:[#allocation2 + $0x141] sm:$0xff]
        %v733 = vld [vmem:[#allocation2 + $0x151] sm:$0xff]
        %v734 = vld [vmem:[#allocation2 + $0x159] sm:$0xff]
        %v735 = vld [vmem:[#allocation2 + $0x169] sm:$0xff]
        %v736 = vld [vmem:[#allocation2 + $0x171] sm:$0xff]
        %v737 = vld [vmem:[#allocation2 + $0x2] sm:$0xff]
        %v738 = vld [vmem:[#allocation2 + $0xa] sm:$0xff]
        %v739 = vld [vmem:[#allocation2 + $0x1a] sm:$0xff]
        %v740 = vld [vmem:[#allocation2 + $0x22] sm:$0xff]
        %v741 = vld [vmem:[#allocation2 + $0x32] sm:$0xff]
        %v742 = vld [vmem:[#allocation2 + $0x3a] sm:$0xff]
        %v743 = vld [vmem:[#allocation2 + $0x4a] sm:$0xff]
        %v744 = vld [vmem:[#allocation2 + $0x52] sm:$0xff]
        %v745 = vld [vmem:[#allocation2 + $0x62] sm:$0xff]
        %v746 = vld [vmem:[#allocation2 + $0x6a] sm:$0xff]
        %v747 = vld [vmem:[#allocation2 + $0x7a] sm:$0xff]
        %v748 = vld [vmem:[#allocation2 + $0x82] sm:$0xff]
        %v749 = vld [vmem:[#allocation2 + $0x92] sm:$0xff]
        %v750 = vld [vmem:[#allocation2 + $0x9a] sm:$0xff]
        %v751 = vld [vmem:[#allocation2 + $0xaa] sm:$0xff]
        %v752 = vld [vmem:[#allocation2 + $0xb2] sm:$0xff]
        %v753 = vld [vmem:[#allocation2 + $0xc2] sm:$0xff]
        %v754 = vld [vmem:[#allocation2 + $0xca] sm:$0xff]
        %v755 = vld [vmem:[#allocation2 + $0xda] sm:$0xff]
        %v756 = vld [vmem:[#allocation2 + $0xe2] sm:$0xff]
        %v757 = vld [vmem:[#allocation2 + $0xf2] sm:$0xff]
        %v758 = vld [vmem:[#allocation2 + $0xfa] sm:$0xff]
        %v759 = vld [vmem:[#allocation2 + $0x10a] sm:$0xff]
        %v760 = vld [vmem:[#allocation2 + $0x112] sm:$0xff]
        %v761 = vld [vmem:[#allocation2 + $0x122] sm:$0xff]
        %v762 = vld [vmem:[#allocation2 + $0x12a] sm:$0xff]
        %v763 = vld [vmem:[#allocation2 + $0x13a] sm:$0xff]
        %v764 = vld [vmem:[#allocation2 + $0x142] sm:$0xff]
        %v765 = vld [vmem:[#allocation2 + $0x152] sm:$0xff]
        %v766 = vld [vmem:[#allocation2 + $0x15a] sm:$0xff]
        %v767 = vld [vmem:[#allocation2 + $0x16a] sm:$0xff]
        %v768 = vld [vmem:[#allocation2 + $0x172] sm:$0xff]
        %v769 = vld [vmem:[%s640] sm:$0xff]
        %v770 = vld [vmem:[%s640 + $0x8] sm:$0xff]
        %v771 = vld [vmem:[%s640 + $0x18] sm:$0xff]
        %v772 = vld [vmem:[%s640 + $0x20] sm:$0xff]
        %v773 = vld [vmem:[%s640 + $0x30] sm:$0xff]
        %v774 = vld [vmem:[%s640 + $0x38] sm:$0xff]
        %v775 = vld [vmem:[%s640 + $0x48] sm:$0xff]
        %v776 = vld [vmem:[%s640 + $0x50] sm:$0xff]
        %v777 = vld [vmem:[%s640 + $0x60] sm:$0xff]
        %v778 = vld [vmem:[%s640 + $0x68] sm:$0xff]
        %v779 = vld [vmem:[%s640 + $0x78] sm:$0xff]
        %v780 = vld [vmem:[%s640 + $0x80] sm:$0xff]
        %v781 = vld [vmem:[%s640 + $0x90] sm:$0xff]
        %v782 = vld [vmem:[%s640 + $0x98] sm:$0xff]
        %v783 = vld [vmem:[%s640 + $0xa8] sm:$0xff]
        %v784 = vld [vmem:[%s640 + $0xb0] sm:$0xff]
        %v785 = vld [vmem:[%s640 + $0xc0] sm:$0xff]
        %v786 = vld [vmem:[%s640 + $0xc8] sm:$0xff]
        %v787 = vld [vmem:[%s640 + $0xd8] sm:$0xff]
        %v788 = vld [vmem:[%s640 + $0xe0] sm:$0xff]
        %v789 = vld [vmem:[%s640 + $0xf0] sm:$0xff]
        %v790 = vld [vmem:[%s640 + $0xf8] sm:$0xff]
        %v791 = vld [vmem:[%s640 + $0x108] sm:$0xff]
        %v792 = vld [vmem:[%s640 + $0x110] sm:$0xff]
        %v793 = vld [vmem:[%s640 + $0x120] sm:$0xff]
        %v794 = vld [vmem:[%s640 + $0x128] sm:$0xff]
        %v795 = vld [vmem:[%s640 + $0x138] sm:$0xff]
        %v796 = vld [vmem:[%s640 + $0x140] sm:$0xff]
        %v797 = vld [vmem:[%s640 + $0x150] sm:$0xff]
        %v798 = vld [vmem:[%s640 + $0x158] sm:$0xff]
        %v799 = vld [vmem:[%s640 + $0x168] sm:$0xff]
        %v800 = vld [vmem:[%s640 + $0x170] sm:$0xff]
        %v801 = vld [vmem:[%s640 + $0x1] sm:$0xff]
        %v802 = vld [vmem:[%s640 + $0x9] sm:$0xff]
        %v803 = vld [vmem:[%s640 + $0x19] sm:$0xff]
        %v804 = vld [vmem:[%s640 + $0x21] sm:$0xff]
        %v805 = vld [vmem:[%s640 + $0x31] sm:$0xff]
        %v806 = vld [vmem:[%s640 + $0x39] sm:$0xff]
        %v807 = vld [vmem:[%s640 + $0x49] sm:$0xff]
        %v808 = vld [vmem:[%s640 + $0x51] sm:$0xff]
        %v809 = vld [vmem:[%s640 + $0x61] sm:$0xff]
        %v810 = vld [vmem:[%s640 + $0x69] sm:$0xff]
        %v811 = vld [vmem:[%s640 + $0x79] sm:$0xff]
        %v812 = vld [vmem:[%s640 + $0x81] sm:$0xff]
        %v813 = vld [vmem:[%s640 + $0x91] sm:$0xff]
        %v814 = vld [vmem:[%s640 + $0x99] sm:$0xff]
        %v815 = vld [vmem:[%s640 + $0xa9] sm:$0xff]
        %v816 = vld [vmem:[%s640 + $0xb1] sm:$0xff]
        %v817 = vld [vmem:[%s640 + $0xc1] sm:$0xff]
        %v818 = vld [vmem:[%s640 + $0xc9] sm:$0xff]
        %v819 = vld [vmem:[%s640 + $0xd9] sm:$0xff]
        %v820 = vld [vmem:[%s640 + $0xe1] sm:$0xff]
        %v821 = vld [vmem:[%s640 + $0xf1] sm:$0xff]
        %v822 = vld [vmem:[%s640 + $0xf9] sm:$0xff]
        %v823 = vld [vmem:[%s640 + $0x109] sm:$0xff]
        %v824 = vld [vmem:[%s640 + $0x111] sm:$0xff]
        %v825 = vld [vmem:[%s640 + $0x121] sm:$0xff]
        %v826 = vld [vmem:[%s640 + $0x129] sm:$0xff]
        %v827 = vld [vmem:[%s640 + $0x139] sm:$0xff]
        %v828 = vld [vmem:[%s640 + $0x141] sm:$0xff]
        %v829 = vld [vmem:[%s640 + $0x151] sm:$0xff]
        %v830 = vld [vmem:[%s640 + $0x159] sm:$0xff]
        %v831 = vld [vmem:[%s640 + $0x169] sm:$0xff]
        %v832 = vld [vmem:[%s640 + $0x171] sm:$0xff]
        %v833 = vld [vmem:[%s640 + $0x2] sm:$0xff]
        %v834 = vld [vmem:[%s640 + $0xa] sm:$0xff]
        %v835 = vld [vmem:[%s640 + $0x1a] sm:$0xff]
        %v836 = vld [vmem:[%s640 + $0x22] sm:$0xff]
        %v837 = vld [vmem:[%s640 + $0x32] sm:$0xff]
        %v838 = vld [vmem:[%s640 + $0x3a] sm:$0xff]
        %v839 = vld [vmem:[%s640 + $0x4a] sm:$0xff]
        %v840 = vld [vmem:[%s640 + $0x52] sm:$0xff]
        %v841 = vld [vmem:[%s640 + $0x62] sm:$0xff]
        %v842 = vld [vmem:[%s640 + $0x6a] sm:$0xff]
        %v843 = vld [vmem:[%s640 + $0x7a] sm:$0xff]
        %v844 = vld [vmem:[%s640 + $0x82] sm:$0xff]
        %v845 = vld [vmem:[%s640 + $0x92] sm:$0xff]
        %v846 = vld [vmem:[%s640 + $0x9a] sm:$0xff]
        %v847 = vld [vmem:[%s640 + $0xaa] sm:$0xff]
        %v848 = vld [vmem:[%s640 + $0xb2] sm:$0xff]
        %v849 = vld [vmem:[%s640 + $0xc2] sm:$0xff]
        %v850 = vld [vmem:[%s640 + $0xca] sm:$0xff]
        %v851 = vld [vmem:[%s640 + $0xda] sm:$0xff]
        %v852 = vld [vmem:[%s640 + $0xe2] sm:$0xff]
        %v853 = vld [vmem:[%s640 + $0xf2] sm:$0xff]
        %v854 = vld [vmem:[%s640 + $0xfa] sm:$0xff]
        %v855 = vld [vmem:[%s640 + $0x10a] sm:$0xff]
        %v856 = vld [vmem:[%s640 + $0x112] sm:$0xff]
        %v857 = vld [vmem:[%s640 + $0x122] sm:$0xff]
        %v858 = vld [vmem:[%s640 + $0x12a] sm:$0xff]
        %v859 = vld [vmem:[%s640 + $0x13a] sm:$0xff]
        %v860 = vld [vmem:[%s640 + $0x142] sm:$0xff]
        %v861 = vld [vmem:[%s640 + $0x152] sm:$0xff]
        %v862 = vld [vmem:[%s640 + $0x15a] sm:$0xff]
        %v863 = vld [vmem:[%s640 + $0x16a] sm:$0xff]
        %v864 = vld [vmem:[%s640 + $0x172] sm:$0xff]
        %s865 = scalar_lea.vmem [#allocation2], 48
        %v866 = vld [vmem:[%s865] sm:$0xff]
        %v867 = vld [vmem:[%s865 + $0x8] sm:$0xff]
        %v868 = vld [vmem:[%s865 + $0x18] sm:$0xff]
        %v869 = vld [vmem:[%s865 + $0x20] sm:$0xff]
        %v870 = vld [vmem:[%s865 + $0x30] sm:$0xff]
        %v871 = vld [vmem:[%s865 + $0x38] sm:$0xff]
        %v872 = vld [vmem:[%s865 + $0x48] sm:$0xff]
        %v873 = vld [vmem:[%s865 + $0x50] sm:$0xff]
        %v874 = vld [vmem:[%s865 + $0x60] sm:$0xff]
        %v875 = vld [vmem:[%s865 + $0x68] sm:$0xff]
        %v876 = vld [vmem:[%s865 + $0x78] sm:$0xff]
        %v877 = vld [vmem:[%s865 + $0x80] sm:$0xff]
        %v878 = vld [vmem:[%s865 + $0x90] sm:$0xff]
        %v879 = vld [vmem:[%s865 + $0x98] sm:$0xff]
        %v880 = vld [vmem:[%s865 + $0xa8] sm:$0xff]
        %v881 = vld [vmem:[%s865 + $0xb0] sm:$0xff]
        %v882 = vld [vmem:[%s865 + $0xc0] sm:$0xff]
        %v883 = vld [vmem:[%s865 + $0xc8] sm:$0xff]
        %v884 = vld [vmem:[%s865 + $0xd8] sm:$0xff]
        %v885 = vld [vmem:[%s865 + $0xe0] sm:$0xff]
        %v886 = vld [vmem:[%s865 + $0xf0] sm:$0xff]
        %v887 = vld [vmem:[%s865 + $0xf8] sm:$0xff]
        %v888 = vld [vmem:[%s865 + $0x108] sm:$0xff]
        %v889 = vld [vmem:[%s865 + $0x110] sm:$0xff]
        %v890 = vld [vmem:[%s865 + $0x120] sm:$0xff]
        %v891 = vld [vmem:[%s865 + $0x128] sm:$0xff]
        %v892 = vld [vmem:[%s865 + $0x138] sm:$0xff]
        %v893 = vld [vmem:[%s865 + $0x140] sm:$0xff]
        %v894 = vld [vmem:[%s865 + $0x150] sm:$0xff]
        %v895 = vld [vmem:[%s865 + $0x158] sm:$0xff]
        %v896 = vld [vmem:[%s865 + $0x168] sm:$0xff]
        %v897 = vld [vmem:[%s865 + $0x170] sm:$0xff]
        %v898 = vld [vmem:[%s865 + $0x1] sm:$0xff]
        %v899 = vld [vmem:[%s865 + $0x9] sm:$0xff]
        %v900 = vld [vmem:[%s865 + $0x19] sm:$0xff]
        %v901 = vld [vmem:[%s865 + $0x21] sm:$0xff]
        %v902 = vld [vmem:[%s865 + $0x31] sm:$0xff]
        %v903 = vld [vmem:[%s865 + $0x39] sm:$0xff]
        %v904 = vld [vmem:[%s865 + $0x49] sm:$0xff]
        %v905 = vld [vmem:[%s865 + $0x51] sm:$0xff]
        %v906 = vld [vmem:[%s865 + $0x61] sm:$0xff]
        %v907 = vld [vmem:[%s865 + $0x69] sm:$0xff]
        %v908 = vld [vmem:[%s865 + $0x79] sm:$0xff]
        %v909 = vld [vmem:[%s865 + $0x81] sm:$0xff]
        %v910 = vld [vmem:[%s865 + $0x91] sm:$0xff]
        %v911 = vld [vmem:[%s865 + $0x99] sm:$0xff]
        %v912 = vld [vmem:[%s865 + $0xa9] sm:$0xff]
        %v913 = vld [vmem:[%s865 + $0xb1] sm:$0xff]
        %v914 = vld [vmem:[%s865 + $0xc1] sm:$0xff]
        %v915 = vld [vmem:[%s865 + $0xc9] sm:$0xff]
        %v916 = vld [vmem:[%s865 + $0xd9] sm:$0xff]
        %v917 = vld [vmem:[%s865 + $0xe1] sm:$0xff]
        %v918 = vld [vmem:[%s865 + $0xf1] sm:$0xff]
        %v919 = vld [vmem:[%s865 + $0xf9] sm:$0xff]
        %v920 = vld [vmem:[%s865 + $0x109] sm:$0xff]
        %v921 = vld [vmem:[%s865 + $0x111] sm:$0xff]
        %v922 = vld [vmem:[%s865 + $0x121] sm:$0xff]
        %v923 = vld [vmem:[%s865 + $0x129] sm:$0xff]
        %v924 = vld [vmem:[%s865 + $0x139] sm:$0xff]
        %v925 = vld [vmem:[%s865 + $0x141] sm:$0xff]
        %v926 = vld [vmem:[%s865 + $0x151] sm:$0xff]
        %v927 = vld [vmem:[%s865 + $0x159] sm:$0xff]
        %v928 = vld [vmem:[%s865 + $0x169] sm:$0xff]
        %v929 = vld [vmem:[%s865 + $0x171] sm:$0xff]
        %v930 = vld [vmem:[%s865 + $0x2] sm:$0xff]
        %v931 = vld [vmem:[%s865 + $0xa] sm:$0xff]
        %v932 = vld [vmem:[%s865 + $0x1a] sm:$0xff]
        %v933 = vld [vmem:[%s865 + $0x22] sm:$0xff]
        %v934 = vld [vmem:[%s865 + $0x32] sm:$0xff]
        %v935 = vld [vmem:[%s865 + $0x3a] sm:$0xff]
        %v936 = vld [vmem:[%s865 + $0x4a] sm:$0xff]
        %v937 = vld [vmem:[%s865 + $0x52] sm:$0xff]
        %v938 = vld [vmem:[%s865 + $0x62] sm:$0xff]
        %v939 = vld [vmem:[%s865 + $0x6a] sm:$0xff]
        %v940 = vld [vmem:[%s865 + $0x7a] sm:$0xff]
        %v941 = vld [vmem:[%s865 + $0x82] sm:$0xff]
        %v942 = vld [vmem:[%s865 + $0x92] sm:$0xff]
        %v943 = vld [vmem:[%s865 + $0x9a] sm:$0xff]
        %v944 = vld [vmem:[%s865 + $0xaa] sm:$0xff]
        %v945 = vld [vmem:[%s865 + $0xb2] sm:$0xff]
        %v946 = vld [vmem:[%s865 + $0xc2] sm:$0xff]
        %v947 = vld [vmem:[%s865 + $0xca] sm:$0xff]
        %v948 = vld [vmem:[%s865 + $0xda] sm:$0xff]
        %v949 = vld [vmem:[%s865 + $0xe2] sm:$0xff]
        %v950 = vld [vmem:[%s865 + $0xf2] sm:$0xff]
        %v951 = vld [vmem:[%s865 + $0xfa] sm:$0xff]
        %v952 = vld [vmem:[%s865 + $0x10a] sm:$0xff]
        %v953 = vld [vmem:[%s865 + $0x112] sm:$0xff]
        %v954 = vld [vmem:[%s865 + $0x122] sm:$0xff]
        %v955 = vld [vmem:[%s865 + $0x12a] sm:$0xff]
        %v956 = vld [vmem:[%s865 + $0x13a] sm:$0xff]
        %v957 = vld [vmem:[%s865 + $0x142] sm:$0xff]
        %v958 = vld [vmem:[%s865 + $0x152] sm:$0xff]
        %v959 = vld [vmem:[%s865 + $0x15a] sm:$0xff]
        %v960 = vld [vmem:[%s865 + $0x16a] sm:$0xff]
        %v961 = vld [vmem:[%s865 + $0x172] sm:$0xff]
        %v962 = vpack.c.bf16 %v674, %v673
        %v963 = vpack.c.bf16 %v706, %v705
        %v964 = vpack.c.bf16 %v738, %v737
        %v965 = vpack.c.bf16 %v770, %v769
        %v966 = vpack.c.bf16 %v802, %v801
        %v967 = vpack.c.bf16 %v834, %v833
        %v968 = vpack.c.bf16 %v867, %v866
        %v969 = vpack.c.bf16 %v899, %v898
        %v970 = vpack.c.bf16 %v931, %v930
        %v971 = vpack.c.bf16 %v676, %v675
        %v972 = vpack.c.bf16 %v708, %v707
        %v973 = vpack.c.bf16 %v740, %v739
        %v974 = vpack.c.bf16 %v772, %v771
        %v975 = vpack.c.bf16 %v804, %v803
        %v976 = vpack.c.bf16 %v836, %v835
        %v977 = vpack.c.bf16 %v869, %v868
        %v978 = vpack.c.bf16 %v901, %v900
        %v979 = vpack.c.bf16 %v933, %v932
        %v980 = vpack.c.bf16 %v678, %v677
        %v981 = vpack.c.bf16 %v710, %v709
        %v982 = vpack.c.bf16 %v742, %v741
        %v983 = vpack.c.bf16 %v774, %v773
        %v984 = vpack.c.bf16 %v806, %v805
        %v985 = vpack.c.bf16 %v838, %v837
        %v986 = vpack.c.bf16 %v871, %v870
        %v987 = vpack.c.bf16 %v903, %v902
        %v988 = vpack.c.bf16 %v935, %v934
        %v989 = vpack.c.bf16 %v680, %v679
        %v990 = vpack.c.bf16 %v712, %v711
        %v991 = vpack.c.bf16 %v744, %v743
        %v992 = vpack.c.bf16 %v776, %v775
        %v993 = vpack.c.bf16 %v808, %v807
        %v994 = vpack.c.bf16 %v840, %v839
        %v995 = vpack.c.bf16 %v873, %v872
        %v996 = vpack.c.bf16 %v905, %v904
        %v997 = vpack.c.bf16 %v937, %v936
        %v998 = vpack.c.bf16 %v682, %v681
        %v999 = vpack.c.bf16 %v714, %v713
        %v1000 = vpack.c.bf16 %v746, %v745
        %v1001 = vpack.c.bf16 %v778, %v777
        %v1002 = vpack.c.bf16 %v810, %v809
        %v1003 = vpack.c.bf16 %v842, %v841
        %v1004 = vpack.c.bf16 %v875, %v874
        %v1005 = vpack.c.bf16 %v907, %v906
        %v1006 = vpack.c.bf16 %v939, %v938
        %v1007 = vpack.c.bf16 %v684, %v683
        %v1008 = vpack.c.bf16 %v716, %v715
        %v1009 = vpack.c.bf16 %v748, %v747
        %v1010 = vpack.c.bf16 %v780, %v779
        %v1011 = vpack.c.bf16 %v812, %v811
        %v1012 = vpack.c.bf16 %v844, %v843
        %v1013 = vpack.c.bf16 %v877, %v876
        %v1014 = vpack.c.bf16 %v909, %v908
        %v1015 = vpack.c.bf16 %v941, %v940
        %v1016 = vpack.c.bf16 %v686, %v685
        %v1017 = vpack.c.bf16 %v718, %v717
        %v1018 = vpack.c.bf16 %v750, %v749
        %v1019 = vpack.c.bf16 %v782, %v781
        %v1020 = vpack.c.bf16 %v814, %v813
        %v1021 = vpack.c.bf16 %v846, %v845
        %v1022 = vpack.c.bf16 %v879, %v878
        %v1023 = vpack.c.bf16 %v911, %v910
        %v1024 = vpack.c.bf16 %v943, %v942
        %v1025 = vpack.c.bf16 %v688, %v687
        %v1026 = vpack.c.bf16 %v720, %v719
        %v1027 = vpack.c.bf16 %v752, %v751
        %v1028 = vpack.c.bf16 %v784, %v783
        %v1029 = vpack.c.bf16 %v816, %v815
        %v1030 = vpack.c.bf16 %v848, %v847
        %v1031 = vpack.c.bf16 %v881, %v880
        %v1032 = vpack.c.bf16 %v913, %v912
        %v1033 = vpack.c.bf16 %v945, %v944
        %v1034 = vpack.c.bf16 %v690, %v689
        %v1035 = vpack.c.bf16 %v722, %v721
        %v1036 = vpack.c.bf16 %v754, %v753
        %v1037 = vpack.c.bf16 %v786, %v785
        %v1038 = vpack.c.bf16 %v818, %v817
        %v1039 = vpack.c.bf16 %v850, %v849
        %v1040 = vpack.c.bf16 %v883, %v882
        %v1041 = vpack.c.bf16 %v915, %v914
        %v1042 = vpack.c.bf16 %v947, %v946
        %v1043 = vpack.c.bf16 %v692, %v691
        %v1044 = vpack.c.bf16 %v724, %v723
        %v1045 = vpack.c.bf16 %v756, %v755
        %v1046 = vpack.c.bf16 %v788, %v787
        %v1047 = vpack.c.bf16 %v820, %v819
        %v1048 = vpack.c.bf16 %v852, %v851
        %v1049 = vpack.c.bf16 %v885, %v884
        %v1050 = vpack.c.bf16 %v917, %v916
        %v1051 = vpack.c.bf16 %v949, %v948
        %v1052 = vpack.c.bf16 %v694, %v693
        %v1053 = vpack.c.bf16 %v726, %v725
        %v1054 = vpack.c.bf16 %v758, %v757
        %v1055 = vpack.c.bf16 %v790, %v789
        %v1056 = vpack.c.bf16 %v822, %v821
        %v1057 = vpack.c.bf16 %v854, %v853
        %v1058 = vpack.c.bf16 %v887, %v886
        %v1059 = vpack.c.bf16 %v919, %v918
        %v1060 = vpack.c.bf16 %v951, %v950
        %v1061 = vpack.c.bf16 %v696, %v695
        %v1062 = vpack.c.bf16 %v728, %v727
        %v1063 = vpack.c.bf16 %v760, %v759
        %v1064 = vpack.c.bf16 %v792, %v791
        %v1065 = vpack.c.bf16 %v824, %v823
        %v1066 = vpack.c.bf16 %v856, %v855
        %v1067 = vpack.c.bf16 %v889, %v888
        %v1068 = vpack.c.bf16 %v921, %v920
        %v1069 = vpack.c.bf16 %v953, %v952
        %v1070 = vpack.c.bf16 %v698, %v697
        %v1071 = vpack.c.bf16 %v730, %v729
        %v1072 = vpack.c.bf16 %v762, %v761
        %v1073 = vpack.c.bf16 %v794, %v793
        %v1074 = vpack.c.bf16 %v826, %v825
        %v1075 = vpack.c.bf16 %v858, %v857
        %v1076 = vpack.c.bf16 %v891, %v890
        %v1077 = vpack.c.bf16 %v923, %v922
        %v1078 = vpack.c.bf16 %v955, %v954
        %v1079 = vpack.c.bf16 %v700, %v699
        %v1080 = vpack.c.bf16 %v732, %v731
        %v1081 = vpack.c.bf16 %v764, %v763
        %v1082 = vpack.c.bf16 %v796, %v795
        %v1083 = vpack.c.bf16 %v828, %v827
        %v1084 = vpack.c.bf16 %v860, %v859
        %v1085 = vpack.c.bf16 %v893, %v892
        %v1086 = vpack.c.bf16 %v925, %v924
        %v1087 = vpack.c.bf16 %v957, %v956
        %v1088 = vpack.c.bf16 %v702, %v701
        %v1089 = vpack.c.bf16 %v734, %v733
        %v1090 = vpack.c.bf16 %v766, %v765
        %v1091 = vpack.c.bf16 %v798, %v797
        %v1092 = vpack.c.bf16 %v830, %v829
        %v1093 = vpack.c.bf16 %v862, %v861
        %v1094 = vpack.c.bf16 %v895, %v894
        %v1095 = vpack.c.bf16 %v927, %v926
        %v1096 = vpack.c.bf16 %v959, %v958
        %v1097 = vpack.c.bf16 %v704, %v703
        %v1098 = vpack.c.bf16 %v736, %v735
        %v1099 = vpack.c.bf16 %v768, %v767
        %v1100 = vpack.c.bf16 %v800, %v799
        %v1101 = vpack.c.bf16 %v832, %v831
        %v1102 = vpack.c.bf16 %v864, %v863
        %v1103 = vpack.c.bf16 %v897, %v896
        %v1104 = vpack.c.bf16 %v929, %v928
        %v1105 = vpack.c.bf16 %v961, %v960
        %v1106 = vld [vmem:[#allocation8] sm:$0xf]
        %v1107 = vld [vmem:[#allocation8 + $0x4] sm:$0xf]
        %v1108 = vld [vmem:[#allocation8 + $0x8] sm:$0xf]
        %v1109 = vld [vmem:[#allocation8 + $0xc] sm:$0xf]
        %v1110 = vld [vmem:[#allocation8 + $0x10] sm:$0xf]
        %v1111 = vld [vmem:[#allocation8 + $0x14] sm:$0xf]
        %v1112 = vld [vmem:[#allocation8 + $0x18] sm:$0xf]
        %v1113 = vld [vmem:[#allocation8 + $0x1c] sm:$0xf]
        %v1114 = vld [vmem:[#allocation8 + $0x20] sm:$0xf]
        %v1115 = vld [vmem:[#allocation8 + $0x24] sm:$0xf]
        %v1116 = vld [vmem:[#allocation8 + $0x28] sm:$0xf]
        %v1117 = vld [vmem:[#allocation8 + $0x2c] sm:$0xf]
        %v1118 = vld [vmem:[#allocation8 + $0x30] sm:$0xf]
        %v1119 = vld [vmem:[#allocation8 + $0x34] sm:$0xf]
        %v1120 = vld [vmem:[#allocation8 + $0x38] sm:$0xf]
        %v1121 = vld [vmem:[#allocation8 + $0x3c] sm:$0xf]
        %v1122 = vld [vmem:[#allocation8 + $0x40] sm:$0xf]
        %v1123 = vld [vmem:[#allocation8 + $0x44] sm:$0xf]
        %v1124 = vld [vmem:[#allocation8 + $0x48] sm:$0xf]
        %v1125 = vld [vmem:[#allocation8 + $0x4c] sm:$0xf]
        %v1126 = vld [vmem:[#allocation8 + $0x50] sm:$0xf]
        %v1127 = vld [vmem:[#allocation8 + $0x54] sm:$0xf]
        %v1128 = vld [vmem:[#allocation8 + $0x58] sm:$0xf]
        %v1129 = vld [vmem:[#allocation8 + $0x5c] sm:$0xf]
        %v1130 = vld [vmem:[#allocation8 + $0x60] sm:$0xf]
        %v1131 = vld [vmem:[#allocation8 + $0x64] sm:$0xf]
        %v1132 = vld [vmem:[#allocation8 + $0x68] sm:$0xf]
        %v1133 = vld [vmem:[#allocation8 + $0x6c] sm:$0xf]
        %v1134 = vld [vmem:[#allocation8 + $0x70] sm:$0xf]
        %v1135 = vld [vmem:[#allocation8 + $0x74] sm:$0xf]
        %v1136 = vld [vmem:[#allocation8 + $0x78] sm:$0xf]
        %v1137 = vld [vmem:[#allocation8 + $0x7c] sm:$0xf]
        %v1138 = vld [vmem:[#allocation8 + $0x80] sm:$0xf]
        %v1139 = vld [vmem:[#allocation8 + $0x84] sm:$0xf]
        %v1140 = vld [vmem:[#allocation8 + $0x88] sm:$0xf]
        %v1141 = vld [vmem:[#allocation8 + $0x8c] sm:$0xf]
        %v1142 = vld [vmem:[#allocation8 + $0x90] sm:$0xf]
        %v1143 = vld [vmem:[#allocation8 + $0x94] sm:$0xf]
        %v1144 = vld [vmem:[#allocation8 + $0x98] sm:$0xf]
        %v1145 = vld [vmem:[#allocation8 + $0x9c] sm:$0xf]
        %v1146 = vld [vmem:[#allocation8 + $0xa0] sm:$0xf]
        %v1147 = vld [vmem:[#allocation8 + $0xa4] sm:$0xf]
        %v1148 = vld [vmem:[#allocation8 + $0xa8] sm:$0xf]
        %v1149 = vld [vmem:[#allocation8 + $0xac] sm:$0xf]
        %v1150 = vld [vmem:[#allocation8 + $0xb0] sm:$0xf]
        %v1151 = vld [vmem:[#allocation8 + $0xb4] sm:$0xf]
        %v1152 = vld [vmem:[#allocation8 + $0xb8] sm:$0xf]
        %v1153 = vld [vmem:[#allocation8 + $0xbc] sm:$0xf]
        %v1154 = vld [vmem:[#allocation8 + $0xc0] sm:$0xf]
        %v1155 = vld [vmem:[#allocation8 + $0xc4] sm:$0xf]
        %v1156 = vld [vmem:[#allocation8 + $0xc8] sm:$0xf]
        %v1157 = vld [vmem:[#allocation8 + $0xcc] sm:$0xf]
        %v1158 = vld [vmem:[#allocation8 + $0xd0] sm:$0xf]
        %v1159 = vld [vmem:[#allocation8 + $0xd4] sm:$0xf]
        %v1160 = vld [vmem:[#allocation8 + $0xd8] sm:$0xf]
        %v1161 = vld [vmem:[#allocation8 + $0xdc] sm:$0xf]
        %v1162 = vld [vmem:[#allocation8 + $0xe0] sm:$0xf]
        %v1163 = vld [vmem:[#allocation8 + $0xe4] sm:$0xf]
        %v1164 = vld [vmem:[#allocation8 + $0xe8] sm:$0xf]
        %v1165 = vld [vmem:[#allocation8 + $0xec] sm:$0xf]
        %v1166 = vld [vmem:[#allocation8 + $0xf0] sm:$0xf]
        %v1167 = vld [vmem:[#allocation8 + $0xf4] sm:$0xf]
        %v1168 = vld [vmem:[#allocation8 + $0xf8] sm:$0xf]
        %v1169 = vld [vmem:[#allocation8 + $0xfc] sm:$0xf]
        %v1170 = vld [vmem:[#allocation8 + $0x100] sm:$0xf]
        %v1171 = vld [vmem:[#allocation8 + $0x104] sm:$0xf]
        %v1172 = vld [vmem:[#allocation8 + $0x108] sm:$0xf]
        %v1173 = vld [vmem:[#allocation8 + $0x10c] sm:$0xf]
        %v1174 = vld [vmem:[#allocation8 + $0x110] sm:$0xf]
        %v1175 = vld [vmem:[#allocation8 + $0x114] sm:$0xf]
        %v1176 = vld [vmem:[#allocation8 + $0x118] sm:$0xf]
        %v1177 = vld [vmem:[#allocation8 + $0x11c] sm:$0xf]
        %v1178 = vld [vmem:[#allocation8 + $0x120] sm:$0xf]
        %v1179 = vld [vmem:[#allocation8 + $0x124] sm:$0xf]
        %v1180 = vld [vmem:[#allocation8 + $0x128] sm:$0xf]
        %v1181 = vld [vmem:[#allocation8 + $0x12c] sm:$0xf]
        %v1182 = vld [vmem:[#allocation8 + $0x130] sm:$0xf]
        %v1183 = vld [vmem:[#allocation8 + $0x134] sm:$0xf]
        %v1184 = vld [vmem:[#allocation8 + $0x138] sm:$0xf]
        %v1185 = vld [vmem:[#allocation8 + $0x13c] sm:$0xf]
        %v1186 = vld [vmem:[#allocation8 + $0x140] sm:$0xf]
        %v1187 = vld [vmem:[#allocation8 + $0x144] sm:$0xf]
        %v1188 = vld [vmem:[#allocation8 + $0x148] sm:$0xf]
        %v1189 = vld [vmem:[#allocation8 + $0x14c] sm:$0xf]
        %v1190 = vld [vmem:[#allocation8 + $0x150] sm:$0xf]
        %v1191 = vld [vmem:[#allocation8 + $0x154] sm:$0xf]
        %v1192 = vld [vmem:[#allocation8 + $0x158] sm:$0xf]
        %v1193 = vld [vmem:[#allocation8 + $0x15c] sm:$0xf]
        %v1194 = vld [vmem:[#allocation8 + $0x160] sm:$0xf]
        %v1195 = vld [vmem:[#allocation8 + $0x164] sm:$0xf]
        %v1196 = vld [vmem:[#allocation8 + $0x168] sm:$0xf]
        %v1197 = vld [vmem:[#allocation8 + $0x16c] sm:$0xf]
        %v1198 = vld [vmem:[#allocation8 + $0x170] sm:$0xf]
        %v1199 = vld [vmem:[#allocation8 + $0x174] sm:$0xf]
        %v1200 = vld [vmem:[#allocation8 + $0x178] sm:$0xf]
        %v1201 = vld [vmem:[#allocation8 + $0x17c] sm:$0xf]
        %v1202 = vld [vmem:[#allocation8 + $0x180] sm:$0xf]
        %v1203 = vld [vmem:[#allocation8 + $0x184] sm:$0xf]
        %v1204 = vld [vmem:[#allocation8 + $0x188] sm:$0xf]
        %v1205 = vld [vmem:[#allocation8 + $0x18c] sm:$0xf]
        %v1206 = vld [vmem:[#allocation8 + $0x190] sm:$0xf]
        %v1207 = vld [vmem:[#allocation8 + $0x194] sm:$0xf]
        %v1208 = vld [vmem:[#allocation8 + $0x198] sm:$0xf]
        %v1209 = vld [vmem:[#allocation8 + $0x19c] sm:$0xf]
        %v1210 = vld [vmem:[#allocation8 + $0x1a0] sm:$0xf]
        %v1211 = vld [vmem:[#allocation8 + $0x1a4] sm:$0xf]
        %v1212 = vld [vmem:[#allocation8 + $0x1a8] sm:$0xf]
        %v1213 = vld [vmem:[#allocation8 + $0x1ac] sm:$0xf]
        %v1214 = vld [vmem:[#allocation8 + $0x1b0] sm:$0xf]
        %v1215 = vld [vmem:[#allocation8 + $0x1b4] sm:$0xf]
        %v1216 = vld [vmem:[#allocation8 + $0x1b8] sm:$0xf]
        %v1217 = vld [vmem:[#allocation8 + $0x1bc] sm:$0xf]
        %v1218 = vld [vmem:[#allocation8 + $0x1c0] sm:$0xf]
        %v1219 = vld [vmem:[#allocation8 + $0x1c4] sm:$0xf]
        %v1220 = vld [vmem:[#allocation8 + $0x1c8] sm:$0xf]
        %v1221 = vld [vmem:[#allocation8 + $0x1cc] sm:$0xf]
        %v1222 = vld [vmem:[#allocation8 + $0x1d0] sm:$0xf]
        %v1223 = vld [vmem:[#allocation8 + $0x1d4] sm:$0xf]
        %v1224 = vld [vmem:[#allocation8 + $0x1d8] sm:$0xf]
        %v1225 = vld [vmem:[#allocation8 + $0x1dc] sm:$0xf]
        %v1226 = vld [vmem:[#allocation8 + $0x1e0] sm:$0xf]
        %v1227 = vld [vmem:[#allocation8 + $0x1e4] sm:$0xf]
        %v1228 = vld [vmem:[#allocation8 + $0x1e8] sm:$0xf]
        %v1229 = vld [vmem:[#allocation8 + $0x1ec] sm:$0xf]
        %v1230 = vld [vmem:[#allocation8 + $0x1f0] sm:$0xf]
        %v1231 = vld [vmem:[#allocation8 + $0x1f4] sm:$0xf]
        %v1232 = vld [vmem:[#allocation8 + $0x1f8] sm:$0xf]
        %v1233 = vld [vmem:[#allocation8 + $0x1fc] sm:$0xf]
        %v1234 = vld [vmem:[#allocation8 + $0x200] sm:$0xf]
        %v1235 = vld [vmem:[#allocation8 + $0x204] sm:$0xf]
        %v1236 = vld [vmem:[#allocation8 + $0x208] sm:$0xf]
        %v1237 = vld [vmem:[#allocation8 + $0x20c] sm:$0xf]
        %v1238 = vld [vmem:[#allocation8 + $0x210] sm:$0xf]
        %v1239 = vld [vmem:[#allocation8 + $0x214] sm:$0xf]
        %v1240 = vld [vmem:[#allocation8 + $0x218] sm:$0xf]
        %v1241 = vld [vmem:[#allocation8 + $0x21c] sm:$0xf]
        %v1242 = vld [vmem:[#allocation8 + $0x220] sm:$0xf]
        %v1243 = vld [vmem:[#allocation8 + $0x224] sm:$0xf]
        %v1244 = vld [vmem:[#allocation8 + $0x228] sm:$0xf]
        %v1245 = vld [vmem:[#allocation8 + $0x22c] sm:$0xf]
        %v1246 = vld [vmem:[#allocation8 + $0x230] sm:$0xf]
        %v1247 = vld [vmem:[#allocation8 + $0x234] sm:$0xf]
        %v1248 = vld [vmem:[#allocation8 + $0x238] sm:$0xf]
        %v1249 = vld [vmem:[#allocation8 + $0x23c] sm:$0xf]
        %v1250 = vld [vmem:[%s4] sm:$0x1]
        %v1252 = vperm.slane %v1250, 0
        %v1398 = vunpack.c.l.b16 %v1106
        %v1399 = vunpack.c.l.b16 %v1107
        %v1400 = vunpack.c.l.b16 %v1108
        %v1401 = vunpack.c.l.b16 %v1109
        %v1402 = vunpack.c.l.b16 %v1110
        %v1403 = vunpack.c.l.b16 %v1111
        %v1404 = vunpack.c.l.b16 %v1112
        %v1405 = vunpack.c.l.b16 %v1113
        %v1406 = vunpack.c.l.b16 %v1114
        %v1407 = vunpack.c.l.b16 %v1115
        %v1408 = vunpack.c.l.b16 %v1116
        %v1409 = vunpack.c.l.b16 %v1117
        %v1410 = vunpack.c.l.b16 %v1118
        %v1411 = vunpack.c.l.b16 %v1119
        %v1412 = vunpack.c.l.b16 %v1120
        %v1413 = vunpack.c.l.b16 %v1121
        %v1414 = vunpack.c.l.b16 %v1122
        %v1415 = vunpack.c.l.b16 %v1123
        %v1416 = vunpack.c.l.b16 %v1124
        %v1417 = vunpack.c.l.b16 %v1125
        %v1418 = vunpack.c.l.b16 %v1126
        %v1419 = vunpack.c.l.b16 %v1127
        %v1420 = vunpack.c.l.b16 %v1128
        %v1421 = vunpack.c.l.b16 %v1129
        %v1422 = vunpack.c.l.b16 %v1130
        %v1423 = vunpack.c.l.b16 %v1131
        %v1424 = vunpack.c.l.b16 %v1132
        %v1425 = vunpack.c.l.b16 %v1133
        %v1426 = vunpack.c.l.b16 %v1134
        %v1427 = vunpack.c.l.b16 %v1135
        %v1428 = vunpack.c.l.b16 %v1136
        %v1429 = vunpack.c.l.b16 %v1137
        %v1430 = vunpack.c.l.b16 %v1138
        %v1431 = vunpack.c.l.b16 %v1139
        %v1432 = vunpack.c.l.b16 %v1140
        %v1433 = vunpack.c.l.b16 %v1141
        %v1434 = vunpack.c.l.b16 %v1142
        %v1435 = vunpack.c.l.b16 %v1143
        %v1436 = vunpack.c.l.b16 %v1144
        %v1437 = vunpack.c.l.b16 %v1145
        %v1438 = vunpack.c.l.b16 %v1146
        %v1439 = vunpack.c.l.b16 %v1147
        %v1440 = vunpack.c.l.b16 %v1148
        %v1441 = vunpack.c.l.b16 %v1149
        %v1442 = vunpack.c.l.b16 %v1150
        %v1443 = vunpack.c.l.b16 %v1151
        %v1444 = vunpack.c.l.b16 %v1152
        %v1445 = vunpack.c.l.b16 %v1153
        %v1446 = vunpack.c.l.b16 %v1154
        %v1447 = vunpack.c.l.b16 %v1155
        %v1448 = vunpack.c.l.b16 %v1156
        %v1449 = vunpack.c.l.b16 %v1157
        %v1450 = vunpack.c.l.b16 %v1158
        %v1451 = vunpack.c.l.b16 %v1159
        %v1452 = vunpack.c.l.b16 %v1160
        %v1453 = vunpack.c.l.b16 %v1161
        %v1454 = vunpack.c.l.b16 %v1162
        %v1455 = vunpack.c.l.b16 %v1163
        %v1456 = vunpack.c.l.b16 %v1164
        %v1457 = vunpack.c.l.b16 %v1165
        %v1458 = vunpack.c.l.b16 %v1166
        %v1459 = vunpack.c.l.b16 %v1167
        %v1460 = vunpack.c.l.b16 %v1168
        %v1461 = vunpack.c.l.b16 %v1169
        %v1462 = vunpack.c.l.b16 %v1170
        %v1463 = vunpack.c.l.b16 %v1171
        %v1464 = vunpack.c.l.b16 %v1172
        %v1465 = vunpack.c.l.b16 %v1173
        %v1466 = vunpack.c.l.b16 %v1174
        %v1467 = vunpack.c.l.b16 %v1175
        %v1468 = vunpack.c.l.b16 %v1176
        %v1469 = vunpack.c.l.b16 %v1177
        %v1470 = vunpack.c.l.b16 %v1178
        %v1471 = vunpack.c.l.b16 %v1179
        %v1472 = vunpack.c.l.b16 %v1180
        %v1473 = vunpack.c.l.b16 %v1181
        %v1474 = vunpack.c.l.b16 %v1182
        %v1475 = vunpack.c.l.b16 %v1183
        %v1476 = vunpack.c.l.b16 %v1184
        %v1477 = vunpack.c.l.b16 %v1185
        %v1478 = vunpack.c.l.b16 %v1186
        %v1479 = vunpack.c.l.b16 %v1187
        %v1480 = vunpack.c.l.b16 %v1188
        %v1481 = vunpack.c.l.b16 %v1189
        %v1482 = vunpack.c.l.b16 %v1190
        %v1483 = vunpack.c.l.b16 %v1191
        %v1484 = vunpack.c.l.b16 %v1192
        %v1485 = vunpack.c.l.b16 %v1193
        %v1486 = vunpack.c.l.b16 %v1194
        %v1487 = vunpack.c.l.b16 %v1195
        %v1488 = vunpack.c.l.b16 %v1196
        %v1489 = vunpack.c.l.b16 %v1197
        %v1490 = vunpack.c.l.b16 %v1198
        %v1491 = vunpack.c.l.b16 %v1199
        %v1492 = vunpack.c.l.b16 %v1200
        %v1493 = vunpack.c.l.b16 %v1201
        %v1494 = vunpack.c.l.b16 %v1202
        %v1495 = vunpack.c.l.b16 %v1203
        %v1496 = vunpack.c.l.b16 %v1204
        %v1497 = vunpack.c.l.b16 %v1205
        %v1498 = vunpack.c.l.b16 %v1206
        %v1499 = vunpack.c.l.b16 %v1207
        %v1500 = vunpack.c.l.b16 %v1208
        %v1501 = vunpack.c.l.b16 %v1209
        %v1502 = vunpack.c.l.b16 %v1210
        %v1503 = vunpack.c.l.b16 %v1211
        %v1504 = vunpack.c.l.b16 %v1212
        %v1505 = vunpack.c.l.b16 %v1213
        %v1506 = vunpack.c.l.b16 %v1214
        %v1507 = vunpack.c.l.b16 %v1215
        %v1508 = vunpack.c.l.b16 %v1216
        %v1509 = vunpack.c.l.b16 %v1217
        %v1510 = vunpack.c.l.b16 %v1218
        %v1511 = vunpack.c.l.b16 %v1219
        %v1512 = vunpack.c.l.b16 %v1220
        %v1513 = vunpack.c.l.b16 %v1221
        %v1514 = vunpack.c.l.b16 %v1222
        %v1515 = vunpack.c.l.b16 %v1223
        %v1516 = vunpack.c.l.b16 %v1224
        %v1517 = vunpack.c.l.b16 %v1225
        %v1518 = vunpack.c.l.b16 %v1226
        %v1519 = vunpack.c.l.b16 %v1227
        %v1520 = vunpack.c.l.b16 %v1228
        %v1521 = vunpack.c.l.b16 %v1229
        %v1522 = vunpack.c.l.b16 %v1230
        %v1523 = vunpack.c.l.b16 %v1231
        %v1524 = vunpack.c.l.b16 %v1232
        %v1525 = vunpack.c.l.b16 %v1233
        %v1526 = vunpack.c.l.b16 %v1234
        %v1527 = vunpack.c.l.b16 %v1235
        %v1528 = vunpack.c.l.b16 %v1236
        %v1529 = vunpack.c.l.b16 %v1237
        %v1530 = vunpack.c.l.b16 %v1238
        %v1531 = vunpack.c.l.b16 %v1239
        %v1532 = vunpack.c.l.b16 %v1240
        %v1533 = vunpack.c.l.b16 %v1241
        %v1534 = vunpack.c.l.b16 %v1242
        %v1535 = vunpack.c.l.b16 %v1243
        %v1536 = vunpack.c.l.b16 %v1244
        %v1537 = vunpack.c.l.b16 %v1245
        %v1538 = vunpack.c.l.b16 %v1246
        %v1539 = vunpack.c.l.b16 %v1247
        %v1540 = vunpack.c.l.b16 %v1248
        %v1541 = vunpack.c.l.b16 %v1249
        %v1542 = vpack.c.b16 %v1399, %v1398
        %v1543 = vpack.c.b16 %v1401, %v1400
        %v1544 = vpack.c.b16 %v1403, %v1402
        %v1545 = vpack.c.b16 %v1405, %v1404
        %v1546 = vpack.c.b16 %v1407, %v1406
        %v1547 = vpack.c.b16 %v1409, %v1408
        %v1548 = vpack.c.b16 %v1411, %v1410
        %v1549 = vpack.c.b16 %v1413, %v1412
        %v1550 = vpack.c.b16 %v1415, %v1414
        %v1551 = vpack.c.b16 %v1417, %v1416
        %v1552 = vpack.c.b16 %v1419, %v1418
        %v1553 = vpack.c.b16 %v1421, %v1420
        %v1554 = vpack.c.b16 %v1423, %v1422
        %v1555 = vpack.c.b16 %v1425, %v1424
        %v1556 = vpack.c.b16 %v1427, %v1426
        %v1557 = vpack.c.b16 %v1429, %v1428
        %v1558 = vpack.c.b16 %v1431, %v1430
        %v1559 = vpack.c.b16 %v1433, %v1432
        %v1560 = vpack.c.b16 %v1435, %v1434
        %v1561 = vpack.c.b16 %v1437, %v1436
        %v1562 = vpack.c.b16 %v1439, %v1438
        %v1563 = vpack.c.b16 %v1441, %v1440
        %v1564 = vpack.c.b16 %v1443, %v1442
        %v1565 = vpack.c.b16 %v1445, %v1444
        %v1566 = vpack.c.b16 %v1447, %v1446
        %v1567 = vpack.c.b16 %v1449, %v1448
        %v1568 = vpack.c.b16 %v1451, %v1450
        %v1569 = vpack.c.b16 %v1453, %v1452
        %v1570 = vpack.c.b16 %v1455, %v1454
        %v1571 = vpack.c.b16 %v1457, %v1456
        %v1572 = vpack.c.b16 %v1459, %v1458
        %v1573 = vpack.c.b16 %v1461, %v1460
        %v1574 = vpack.c.b16 %v1463, %v1462
        %v1575 = vpack.c.b16 %v1465, %v1464
        %v1576 = vpack.c.b16 %v1467, %v1466
        %v1577 = vpack.c.b16 %v1469, %v1468
        %v1578 = vpack.c.b16 %v1471, %v1470
        %v1579 = vpack.c.b16 %v1473, %v1472
        %v1580 = vpack.c.b16 %v1475, %v1474
        %v1581 = vpack.c.b16 %v1477, %v1476
        %v1582 = vpack.c.b16 %v1479, %v1478
        %v1583 = vpack.c.b16 %v1481, %v1480
        %v1584 = vpack.c.b16 %v1483, %v1482
        %v1585 = vpack.c.b16 %v1485, %v1484
        %v1586 = vpack.c.b16 %v1487, %v1486
        %v1587 = vpack.c.b16 %v1489, %v1488
        %v1588 = vpack.c.b16 %v1491, %v1490
        %v1589 = vpack.c.b16 %v1493, %v1492
        %v1590 = vpack.c.b16 %v1495, %v1494
        %v1591 = vpack.c.b16 %v1497, %v1496
        %v1592 = vpack.c.b16 %v1499, %v1498
        %v1593 = vpack.c.b16 %v1501, %v1500
        %v1594 = vpack.c.b16 %v1503, %v1502
        %v1595 = vpack.c.b16 %v1505, %v1504
        %v1596 = vpack.c.b16 %v1507, %v1506
        %v1597 = vpack.c.b16 %v1509, %v1508
        %v1598 = vpack.c.b16 %v1511, %v1510
        %v1599 = vpack.c.b16 %v1513, %v1512
        %v1600 = vpack.c.b16 %v1515, %v1514
        %v1601 = vpack.c.b16 %v1517, %v1516
        %v1602 = vpack.c.b16 %v1519, %v1518
        %v1603 = vpack.c.b16 %v1521, %v1520
        %v1604 = vpack.c.b16 %v1523, %v1522
        %v1605 = vpack.c.b16 %v1525, %v1524
        %v1606 = vpack.c.b16 %v1527, %v1526
        %v1607 = vpack.c.b16 %v1529, %v1528
        %v1608 = vpack.c.b16 %v1531, %v1530
        %v1609 = vpack.c.b16 %v1533, %v1532
        %v1610 = vpack.c.b16 %v1535, %v1534
        %v1611 = vpack.c.b16 %v1537, %v1536
        %v1612 = vpack.c.b16 %v1539, %v1538
        %v1613 = vpack.c.b16 %v1541, %v1540
        %1686 = vmatpush.bf16.msra.mxu0 %v1549
        %1687 = vmatpush.bf16.msra.mxu0 %v1548
        %1688 = vmatpush.bf16.msra.mxu0 %v1547
        %1689 = vmatpush.bf16.msra.mxu0 %v1546
        %1690 = vmatpush.bf16.msra.mxu0 %v1545
        %1691 = vmatpush.bf16.msra.mxu0 %v1544
        %1692 = vmatpush.bf16.msra.mxu0 %v1543
        %1693 = vmatpush.bf16.msra.mxu0 %v1542
        %1694 = vmatmul.bf16.gmra.mxu0 %v962
        %v1695 = vpop.f32.mrf.mxu0
        %v1696 = vadd.f32 %v1252, %v1695
        %v1697 = vpop.f32.mrf.mxu0
        %v1698 = vadd.f32 %v1252, %v1697
        %1699 = vmatmul.bf16.gmra.mxu0 %v971
        %v1700 = vpop.f32.mrf.mxu0
        %v1701 = vadd.f32 %v1252, %v1700
        %v1702 = vpop.f32.mrf.mxu0
        %v1703 = vadd.f32 %v1252, %v1702
        %1704 = vmatmul.bf16.gmra.mxu0 %v980
        %v1705 = vpop.f32.mrf.mxu0
        %v1706 = vadd.f32 %v1252, %v1705
        %v1707 = vpop.f32.mrf.mxu0
        %v1708 = vadd.f32 %v1252, %v1707
        %1709 = vmatmul.bf16.gmra.mxu0 %v989
        %v1710 = vpop.f32.mrf.mxu0
        %v1711 = vadd.f32 %v1252, %v1710
        %v1712 = vpop.f32.mrf.mxu0
        %v1713 = vadd.f32 %v1252, %v1712
        %1714 = vmatmul.bf16.gmra.mxu0 %v998
        %v1715 = vpop.f32.mrf.mxu0
        %v1716 = vadd.f32 %v1252, %v1715
        %v1717 = vpop.f32.mrf.mxu0
        %v1718 = vadd.f32 %v1252, %v1717
        %1719 = vmatmul.bf16.gmra.mxu0 %v1007
        %v1720 = vpop.f32.mrf.mxu0
        %v1721 = vadd.f32 %v1252, %v1720
        %v1722 = vpop.f32.mrf.mxu0
        %v1723 = vadd.f32 %v1252, %v1722
        %1724 = vmatmul.bf16.gmra.mxu0 %v1016
        %v1725 = vpop.f32.mrf.mxu0
        %v1726 = vadd.f32 %v1252, %v1725
        %v1727 = vpop.f32.mrf.mxu0
        %v1728 = vadd.f32 %v1252, %v1727
        %1729 = vmatmul.bf16.gmra.mxu0 %v1025
        %v1730 = vpop.f32.mrf.mxu0
        %v1731 = vadd.f32 %v1252, %v1730
        %v1732 = vpop.f32.mrf.mxu0
        %v1733 = vadd.f32 %v1252, %v1732
        %1734 = vmatmul.bf16.gmra.mxu0 %v1034
        %v1735 = vpop.f32.mrf.mxu0
        %v1736 = vadd.f32 %v1252, %v1735
        %v1737 = vpop.f32.mrf.mxu0
        %v1738 = vadd.f32 %v1252, %v1737
        %1739 = vmatmul.bf16.gmra.mxu0 %v1043
        %v1740 = vpop.f32.mrf.mxu0
        %v1741 = vadd.f32 %v1252, %v1740
        %v1742 = vpop.f32.mrf.mxu0
        %v1743 = vadd.f32 %v1252, %v1742
        %1744 = vmatmul.bf16.gmra.mxu0 %v1052
        %v1745 = vpop.f32.mrf.mxu0
        %v1746 = vadd.f32 %v1252, %v1745
        %v1747 = vpop.f32.mrf.mxu0
        %v1748 = vadd.f32 %v1252, %v1747
        %1749 = vmatmul.bf16.gmra.mxu0 %v1061
        %v1750 = vpop.f32.mrf.mxu0
        %v1751 = vadd.f32 %v1252, %v1750
        %v1752 = vpop.f32.mrf.mxu0
        %v1753 = vadd.f32 %v1252, %v1752
        %1754 = vmatmul.bf16.gmra.mxu0 %v1070
        %v1755 = vpop.f32.mrf.mxu0
        %v1756 = vadd.f32 %v1252, %v1755
        %v1757 = vpop.f32.mrf.mxu0
        %v1758 = vadd.f32 %v1252, %v1757
        %1759 = vmatmul.bf16.gmra.mxu0 %v1079
        %v1760 = vpop.f32.mrf.mxu0
        %v1761 = vadd.f32 %v1252, %v1760
        %v1762 = vpop.f32.mrf.mxu0
        %v1763 = vadd.f32 %v1252, %v1762
        %1764 = vmatmul.bf16.gmra.mxu0 %v1088
        %v1765 = vpop.f32.mrf.mxu0
        %v1766 = vadd.f32 %v1252, %v1765
        %v1767 = vpop.f32.mrf.mxu0
        %v1768 = vadd.f32 %v1252, %v1767
        %1769 = vmatmul.bf16.gmra.mxu0 %v1097
        %v1770 = vpop.f32.mrf.mxu0
        %v1771 = vadd.f32 %v1252, %v1770
        %v1772 = vpop.f32.mrf.mxu0
        %v1773 = vadd.f32 %v1252, %v1772
        %1774 = vdwg.mxu0
        %1775 = vmatpush.bf16.msra.mxu0 %v1557
        %1776 = vmatpush.bf16.msra.mxu0 %v1556
        %1777 = vmatpush.bf16.msra.mxu0 %v1555
        %1778 = vmatpush.bf16.msra.mxu0 %v1554
        %1779 = vmatpush.bf16.msra.mxu0 %v1553
        %1780 = vmatpush.bf16.msra.mxu0 %v1552
        %1781 = vmatpush.bf16.msra.mxu0 %v1551
        %1782 = vmatpush.bf16.msra.mxu0 %v1550
        %1783 = vmatmul.bf16.gmra.mxu0 %v963
        %v1784 = vpop.f32.mrf.mxu0
        %v1785 = vadd.f32 %v1696, %v1784
        %v1786 = vpop.f32.mrf.mxu0
        %v1787 = vadd.f32 %v1698, %v1786
        %1788 = vmatmul.bf16.gmra.mxu0 %v972
        %v1789 = vpop.f32.mrf.mxu0
        %v1790 = vadd.f32 %v1701, %v1789
        %v1791 = vpop.f32.mrf.mxu0
        %v1792 = vadd.f32 %v1703, %v1791
        %1793 = vmatmul.bf16.gmra.mxu0 %v981
        %v1794 = vpop.f32.mrf.mxu0
        %v1795 = vadd.f32 %v1706, %v1794
        %v1796 = vpop.f32.mrf.mxu0
        %v1797 = vadd.f32 %v1708, %v1796
        %1798 = vmatmul.bf16.gmra.mxu0 %v990
        %v1799 = vpop.f32.mrf.mxu0
        %v1800 = vadd.f32 %v1711, %v1799
        %v1801 = vpop.f32.mrf.mxu0
        %v1802 = vadd.f32 %v1713, %v1801
        %1803 = vmatmul.bf16.gmra.mxu0 %v999
        %v1804 = vpop.f32.mrf.mxu0
        %v1805 = vadd.f32 %v1716, %v1804
        %v1806 = vpop.f32.mrf.mxu0
        %v1807 = vadd.f32 %v1718, %v1806
        %1808 = vmatmul.bf16.gmra.mxu0 %v1008
        %v1809 = vpop.f32.mrf.mxu0
        %v1810 = vadd.f32 %v1721, %v1809
        %v1811 = vpop.f32.mrf.mxu0
        %v1812 = vadd.f32 %v1723, %v1811
        %1813 = vmatmul.bf16.gmra.mxu0 %v1017
        %v1814 = vpop.f32.mrf.mxu0
        %v1815 = vadd.f32 %v1726, %v1814
        %v1816 = vpop.f32.mrf.mxu0
        %v1817 = vadd.f32 %v1728, %v1816
        %1818 = vmatmul.bf16.gmra.mxu0 %v1026
        %v1819 = vpop.f32.mrf.mxu0
        %v1820 = vadd.f32 %v1731, %v1819
        %v1821 = vpop.f32.mrf.mxu0
        %v1822 = vadd.f32 %v1733, %v1821
        %1823 = vmatmul.bf16.gmra.mxu0 %v1035
        %v1824 = vpop.f32.mrf.mxu0
        %v1825 = vadd.f32 %v1736, %v1824
        %v1826 = vpop.f32.mrf.mxu0
        %v1827 = vadd.f32 %v1738, %v1826
        %1828 = vmatmul.bf16.gmra.mxu0 %v1044
        %v1829 = vpop.f32.mrf.mxu0
        %v1830 = vadd.f32 %v1741, %v1829
        %v1831 = vpop.f32.mrf.mxu0
        %v1832 = vadd.f32 %v1743, %v1831
        %1833 = vmatmul.bf16.gmra.mxu0 %v1053
        %v1834 = vpop.f32.mrf.mxu0
        %v1835 = vadd.f32 %v1746, %v1834
        %v1836 = vpop.f32.mrf.mxu0
        %v1837 = vadd.f32 %v1748, %v1836
        %1838 = vmatmul.bf16.gmra.mxu0 %v1062
        %v1839 = vpop.f32.mrf.mxu0
        %v1840 = vadd.f32 %v1751, %v1839
        %v1841 = vpop.f32.mrf.mxu0
        %v1842 = vadd.f32 %v1753, %v1841
        %1843 = vmatmul.bf16.gmra.mxu0 %v1071
        %v1844 = vpop.f32.mrf.mxu0
        %v1845 = vadd.f32 %v1756, %v1844
        %v1846 = vpop.f32.mrf.mxu0
        %v1847 = vadd.f32 %v1758, %v1846
        %1848 = vmatmul.bf16.gmra.mxu0 %v1080
        %v1849 = vpop.f32.mrf.mxu0
        %v1850 = vadd.f32 %v1761, %v1849
        %v1851 = vpop.f32.mrf.mxu0
        %v1852 = vadd.f32 %v1763, %v1851
        %1853 = vmatmul.bf16.gmra.mxu0 %v1089
        %v1854 = vpop.f32.mrf.mxu0
        %v1855 = vadd.f32 %v1766, %v1854
        %v1856 = vpop.f32.mrf.mxu0
        %v1857 = vadd.f32 %v1768, %v1856
        %1858 = vmatmul.bf16.gmra.mxu0 %v1098
        %v1859 = vpop.f32.mrf.mxu0
        %v1860 = vadd.f32 %v1771, %v1859
        %v1861 = vpop.f32.mrf.mxu0
        %v1862 = vadd.f32 %v1773, %v1861
        %1863 = vdwg.mxu0
        %1864 = vmatpush.bf16.msra.mxu0 %v1565
        %1865 = vmatpush.bf16.msra.mxu0 %v1564
        %1866 = vmatpush.bf16.msra.mxu0 %v1563
        %1867 = vmatpush.bf16.msra.mxu0 %v1562
        %1868 = vmatpush.bf16.msra.mxu0 %v1561
        %1869 = vmatpush.bf16.msra.mxu0 %v1560
        %1870 = vmatpush.bf16.msra.mxu0 %v1559
        %1871 = vmatpush.bf16.msra.mxu0 %v1558
        %1872 = vmatmul.bf16.gmra.mxu0 %v964
        %v1873 = vpop.f32.mrf.mxu0
        %v1874 = vadd.f32 %v1785, %v1873
        %v1875 = vpop.f32.mrf.mxu0
        %v1876 = vadd.f32 %v1787, %v1875
        %1877 = vmatmul.bf16.gmra.mxu0 %v973
        %v1878 = vpop.f32.mrf.mxu0
        %v1879 = vadd.f32 %v1790, %v1878
        %v1880 = vpop.f32.mrf.mxu0
        %v1881 = vadd.f32 %v1792, %v1880
        %1882 = vmatmul.bf16.gmra.mxu0 %v982
        %v1883 = vpop.f32.mrf.mxu0
        %v1884 = vadd.f32 %v1795, %v1883
        %v1885 = vpop.f32.mrf.mxu0
        %v1886 = vadd.f32 %v1797, %v1885
        %1887 = vmatmul.bf16.gmra.mxu0 %v991
        %v1888 = vpop.f32.mrf.mxu0
        %v1889 = vadd.f32 %v1800, %v1888
        %v1890 = vpop.f32.mrf.mxu0
        %v1891 = vadd.f32 %v1802, %v1890
        %1892 = vmatmul.bf16.gmra.mxu0 %v1000
        %v1893 = vpop.f32.mrf.mxu0
        %v1894 = vadd.f32 %v1805, %v1893
        %v1895 = vpop.f32.mrf.mxu0
        %v1896 = vadd.f32 %v1807, %v1895
        %1897 = vmatmul.bf16.gmra.mxu0 %v1009
        %v1898 = vpop.f32.mrf.mxu0
        %v1899 = vadd.f32 %v1810, %v1898
        %v1900 = vpop.f32.mrf.mxu0
        %v1901 = vadd.f32 %v1812, %v1900
        %1902 = vmatmul.bf16.gmra.mxu0 %v1018
        %v1903 = vpop.f32.mrf.mxu0
        %v1904 = vadd.f32 %v1815, %v1903
        %v1905 = vpop.f32.mrf.mxu0
        %v1906 = vadd.f32 %v1817, %v1905
        %1907 = vmatmul.bf16.gmra.mxu0 %v1027
        %v1908 = vpop.f32.mrf.mxu0
        %v1909 = vadd.f32 %v1820, %v1908
        %v1910 = vpop.f32.mrf.mxu0
        %v1911 = vadd.f32 %v1822, %v1910
        %1912 = vmatmul.bf16.gmra.mxu0 %v1036
        %v1913 = vpop.f32.mrf.mxu0
        %v1914 = vadd.f32 %v1825, %v1913
        %v1915 = vpop.f32.mrf.mxu0
        %v1916 = vadd.f32 %v1827, %v1915
        %1917 = vmatmul.bf16.gmra.mxu0 %v1045
        %v1918 = vpop.f32.mrf.mxu0
        %v1919 = vadd.f32 %v1830, %v1918
        %v1920 = vpop.f32.mrf.mxu0
        %v1921 = vadd.f32 %v1832, %v1920
        %1922 = vmatmul.bf16.gmra.mxu0 %v1054
        %v1923 = vpop.f32.mrf.mxu0
        %v1924 = vadd.f32 %v1835, %v1923
        %v1925 = vpop.f32.mrf.mxu0
        %v1926 = vadd.f32 %v1837, %v1925
        %1927 = vmatmul.bf16.gmra.mxu0 %v1063
        %v1928 = vpop.f32.mrf.mxu0
        %v1929 = vadd.f32 %v1840, %v1928
        %v1930 = vpop.f32.mrf.mxu0
        %v1931 = vadd.f32 %v1842, %v1930
        %1932 = vmatmul.bf16.gmra.mxu0 %v1072
        %v1933 = vpop.f32.mrf.mxu0
        %v1934 = vadd.f32 %v1845, %v1933
        %v1935 = vpop.f32.mrf.mxu0
        %v1936 = vadd.f32 %v1847, %v1935
        %1937 = vmatmul.bf16.gmra.mxu0 %v1081
        %v1938 = vpop.f32.mrf.mxu0
        %v1939 = vadd.f32 %v1850, %v1938
        %v1940 = vpop.f32.mrf.mxu0
        %v1941 = vadd.f32 %v1852, %v1940
        %1942 = vmatmul.bf16.gmra.mxu0 %v1090
        %v1943 = vpop.f32.mrf.mxu0
        %v1944 = vadd.f32 %v1855, %v1943
        %v1945 = vpop.f32.mrf.mxu0
        %v1946 = vadd.f32 %v1857, %v1945
        %1947 = vmatmul.bf16.gmra.mxu0 %v1099
        %v1948 = vpop.f32.mrf.mxu0
        %v1949 = vadd.f32 %v1860, %v1948
        %v1950 = vpop.f32.mrf.mxu0
        %v1951 = vadd.f32 %v1862, %v1950
        %1952 = vdwg.mxu0
        %1953 = vmatpush.bf16.msra.mxu0 %v1573
        %1954 = vmatpush.bf16.msra.mxu0 %v1572
        %1955 = vmatpush.bf16.msra.mxu0 %v1571
        %1956 = vmatpush.bf16.msra.mxu0 %v1570
        %1957 = vmatpush.bf16.msra.mxu0 %v1569
        %1958 = vmatpush.bf16.msra.mxu0 %v1568
        %1959 = vmatpush.bf16.msra.mxu0 %v1567
        %1960 = vmatpush.bf16.msra.mxu0 %v1566
        %1961 = vmatmul.bf16.gmra.mxu0 %v965
        %v1962 = vpop.f32.mrf.mxu0
        %v1963 = vadd.f32 %v1874, %v1962
        %v1964 = vpop.f32.mrf.mxu0
        %v1965 = vadd.f32 %v1876, %v1964
        %1966 = vmatmul.bf16.gmra.mxu0 %v974
        %v1967 = vpop.f32.mrf.mxu0
        %v1968 = vadd.f32 %v1879, %v1967
        %v1969 = vpop.f32.mrf.mxu0
        %v1970 = vadd.f32 %v1881, %v1969
        %1971 = vmatmul.bf16.gmra.mxu0 %v983
        %v1972 = vpop.f32.mrf.mxu0
        %v1973 = vadd.f32 %v1884, %v1972
        %v1974 = vpop.f32.mrf.mxu0
        %v1975 = vadd.f32 %v1886, %v1974
        %1976 = vmatmul.bf16.gmra.mxu0 %v992
        %v1977 = vpop.f32.mrf.mxu0
        %v1978 = vadd.f32 %v1889, %v1977
        %v1979 = vpop.f32.mrf.mxu0
        %v1980 = vadd.f32 %v1891, %v1979
        %1981 = vmatmul.bf16.gmra.mxu0 %v1001
        %v1982 = vpop.f32.mrf.mxu0
        %v1983 = vadd.f32 %v1894, %v1982
        %v1984 = vpop.f32.mrf.mxu0
        %v1985 = vadd.f32 %v1896, %v1984
        %1986 = vmatmul.bf16.gmra.mxu0 %v1010
        %v1987 = vpop.f32.mrf.mxu0
        %v1988 = vadd.f32 %v1899, %v1987
        %v1989 = vpop.f32.mrf.mxu0
        %v1990 = vadd.f32 %v1901, %v1989
        %1991 = vmatmul.bf16.gmra.mxu0 %v1019
        %v1992 = vpop.f32.mrf.mxu0
        %v1993 = vadd.f32 %v1904, %v1992
        %v1994 = vpop.f32.mrf.mxu0
        %v1995 = vadd.f32 %v1906, %v1994
        %1996 = vmatmul.bf16.gmra.mxu0 %v1028
        %v1997 = vpop.f32.mrf.mxu0
        %v1998 = vadd.f32 %v1909, %v1997
        %v1999 = vpop.f32.mrf.mxu0
        %v2000 = vadd.f32 %v1911, %v1999
        %2001 = vmatmul.bf16.gmra.mxu0 %v1037
        %v2002 = vpop.f32.mrf.mxu0
        %v2003 = vadd.f32 %v1914, %v2002
        %v2004 = vpop.f32.mrf.mxu0
        %v2005 = vadd.f32 %v1916, %v2004
        %2006 = vmatmul.bf16.gmra.mxu0 %v1046
        %v2007 = vpop.f32.mrf.mxu0
        %v2008 = vadd.f32 %v1919, %v2007
        %v2009 = vpop.f32.mrf.mxu0
        %v2010 = vadd.f32 %v1921, %v2009
        %2011 = vmatmul.bf16.gmra.mxu0 %v1055
        %v2012 = vpop.f32.mrf.mxu0
        %v2013 = vadd.f32 %v1924, %v2012
        %v2014 = vpop.f32.mrf.mxu0
        %v2015 = vadd.f32 %v1926, %v2014
        %2016 = vmatmul.bf16.gmra.mxu0 %v1064
        %v2017 = vpop.f32.mrf.mxu0
        %v2018 = vadd.f32 %v1929, %v2017
        %v2019 = vpop.f32.mrf.mxu0
        %v2020 = vadd.f32 %v1931, %v2019
        %2021 = vmatmul.bf16.gmra.mxu0 %v1073
        %v2022 = vpop.f32.mrf.mxu0
        %v2023 = vadd.f32 %v1934, %v2022
        %v2024 = vpop.f32.mrf.mxu0
        %v2025 = vadd.f32 %v1936, %v2024
        %2026 = vmatmul.bf16.gmra.mxu0 %v1082
        %v2027 = vpop.f32.mrf.mxu0
        %v2028 = vadd.f32 %v1939, %v2027
        %v2029 = vpop.f32.mrf.mxu0
        %v2030 = vadd.f32 %v1941, %v2029
        %2031 = vmatmul.bf16.gmra.mxu0 %v1091
        %v2032 = vpop.f32.mrf.mxu0
        %v2033 = vadd.f32 %v1944, %v2032
        %v2034 = vpop.f32.mrf.mxu0
        %v2035 = vadd.f32 %v1946, %v2034
        %2036 = vmatmul.bf16.gmra.mxu0 %v1100
        %v2037 = vpop.f32.mrf.mxu0
        %v2038 = vadd.f32 %v1949, %v2037
        %v2039 = vpop.f32.mrf.mxu0
        %v2040 = vadd.f32 %v1951, %v2039
        %2041 = vdwg.mxu0
        %2042 = vmatpush.bf16.msra.mxu0 %v1581
        %2043 = vmatpush.bf16.msra.mxu0 %v1580
        %2044 = vmatpush.bf16.msra.mxu0 %v1579
        %2045 = vmatpush.bf16.msra.mxu0 %v1578
        %2046 = vmatpush.bf16.msra.mxu0 %v1577
        %2047 = vmatpush.bf16.msra.mxu0 %v1576
        %2048 = vmatpush.bf16.msra.mxu0 %v1575
        %2049 = vmatpush.bf16.msra.mxu0 %v1574
        %2050 = vmatmul.bf16.gmra.mxu0 %v966
        %v2051 = vpop.f32.mrf.mxu0
        %v2052 = vadd.f32 %v1963, %v2051
        %v2053 = vpop.f32.mrf.mxu0
        %v2054 = vadd.f32 %v1965, %v2053
        %2055 = vmatmul.bf16.gmra.mxu0 %v975
        %v2056 = vpop.f32.mrf.mxu0
        %v2057 = vadd.f32 %v1968, %v2056
        %v2058 = vpop.f32.mrf.mxu0
        %v2059 = vadd.f32 %v1970, %v2058
        %2060 = vmatmul.bf16.gmra.mxu0 %v984
        %v2061 = vpop.f32.mrf.mxu0
        %v2062 = vadd.f32 %v1973, %v2061
        %v2063 = vpop.f32.mrf.mxu0
        %v2064 = vadd.f32 %v1975, %v2063
        %2065 = vmatmul.bf16.gmra.mxu0 %v993
        %v2066 = vpop.f32.mrf.mxu0
        %v2067 = vadd.f32 %v1978, %v2066
        %v2068 = vpop.f32.mrf.mxu0
        %v2069 = vadd.f32 %v1980, %v2068
        %2070 = vmatmul.bf16.gmra.mxu0 %v1002
        %v2071 = vpop.f32.mrf.mxu0
        %v2072 = vadd.f32 %v1983, %v2071
        %v2073 = vpop.f32.mrf.mxu0
        %v2074 = vadd.f32 %v1985, %v2073
        %2075 = vmatmul.bf16.gmra.mxu0 %v1011
        %v2076 = vpop.f32.mrf.mxu0
        %v2077 = vadd.f32 %v1988, %v2076
        %v2078 = vpop.f32.mrf.mxu0
        %v2079 = vadd.f32 %v1990, %v2078
        %2080 = vmatmul.bf16.gmra.mxu0 %v1020
        %v2081 = vpop.f32.mrf.mxu0
        %v2082 = vadd.f32 %v1993, %v2081
        %v2083 = vpop.f32.mrf.mxu0
        %v2084 = vadd.f32 %v1995, %v2083
        %2085 = vmatmul.bf16.gmra.mxu0 %v1029
        %v2086 = vpop.f32.mrf.mxu0
        %v2087 = vadd.f32 %v1998, %v2086
        %v2088 = vpop.f32.mrf.mxu0
        %v2089 = vadd.f32 %v2000, %v2088
        %2090 = vmatmul.bf16.gmra.mxu0 %v1038
        %v2091 = vpop.f32.mrf.mxu0
        %v2092 = vadd.f32 %v2003, %v2091
        %v2093 = vpop.f32.mrf.mxu0
        %v2094 = vadd.f32 %v2005, %v2093
        %2095 = vmatmul.bf16.gmra.mxu0 %v1047
        %v2096 = vpop.f32.mrf.mxu0
        %v2097 = vadd.f32 %v2008, %v2096
        %v2098 = vpop.f32.mrf.mxu0
        %v2099 = vadd.f32 %v2010, %v2098
        %2100 = vmatmul.bf16.gmra.mxu0 %v1056
        %v2101 = vpop.f32.mrf.mxu0
        %v2102 = vadd.f32 %v2013, %v2101
        %v2103 = vpop.f32.mrf.mxu0
        %v2104 = vadd.f32 %v2015, %v2103
        %2105 = vmatmul.bf16.gmra.mxu0 %v1065
        %v2106 = vpop.f32.mrf.mxu0
        %v2107 = vadd.f32 %v2018, %v2106
        %v2108 = vpop.f32.mrf.mxu0
        %v2109 = vadd.f32 %v2020, %v2108
        %2110 = vmatmul.bf16.gmra.mxu0 %v1074
        %v2111 = vpop.f32.mrf.mxu0
        %v2112 = vadd.f32 %v2023, %v2111
        %v2113 = vpop.f32.mrf.mxu0
        %v2114 = vadd.f32 %v2025, %v2113
        %2115 = vmatmul.bf16.gmra.mxu0 %v1083
        %v2116 = vpop.f32.mrf.mxu0
        %v2117 = vadd.f32 %v2028, %v2116
        %v2118 = vpop.f32.mrf.mxu0
        %v2119 = vadd.f32 %v2030, %v2118
        %2120 = vmatmul.bf16.gmra.mxu0 %v1092
        %v2121 = vpop.f32.mrf.mxu0
        %v2122 = vadd.f32 %v2033, %v2121
        %v2123 = vpop.f32.mrf.mxu0
        %v2124 = vadd.f32 %v2035, %v2123
        %2125 = vmatmul.bf16.gmra.mxu0 %v1101
        %v2126 = vpop.f32.mrf.mxu0
        %v2127 = vadd.f32 %v2038, %v2126
        %v2128 = vpop.f32.mrf.mxu0
        %v2129 = vadd.f32 %v2040, %v2128
        %2130 = vdwg.mxu0
        %2131 = vmatpush.bf16.msra.mxu0 %v1589
        %2132 = vmatpush.bf16.msra.mxu0 %v1588
        %2133 = vmatpush.bf16.msra.mxu0 %v1587
        %2134 = vmatpush.bf16.msra.mxu0 %v1586
        %2135 = vmatpush.bf16.msra.mxu0 %v1585
        %2136 = vmatpush.bf16.msra.mxu0 %v1584
        %2137 = vmatpush.bf16.msra.mxu0 %v1583
        %2138 = vmatpush.bf16.msra.mxu0 %v1582
        %2139 = vmatmul.bf16.gmra.mxu0 %v967
        %v2140 = vpop.f32.mrf.mxu0
        %v2141 = vadd.f32 %v2052, %v2140
        %v2142 = vpop.f32.mrf.mxu0
        %v2143 = vadd.f32 %v2054, %v2142
        %2144 = vmatmul.bf16.gmra.mxu0 %v976
        %v2145 = vpop.f32.mrf.mxu0
        %v2146 = vadd.f32 %v2057, %v2145
        %v2147 = vpop.f32.mrf.mxu0
        %v2148 = vadd.f32 %v2059, %v2147
        %2149 = vmatmul.bf16.gmra.mxu0 %v985
        %v2150 = vpop.f32.mrf.mxu0
        %v2151 = vadd.f32 %v2062, %v2150
        %v2152 = vpop.f32.mrf.mxu0
        %v2153 = vadd.f32 %v2064, %v2152
        %2154 = vmatmul.bf16.gmra.mxu0 %v994
        %v2155 = vpop.f32.mrf.mxu0
        %v2156 = vadd.f32 %v2067, %v2155
        %v2157 = vpop.f32.mrf.mxu0
        %v2158 = vadd.f32 %v2069, %v2157
        %2159 = vmatmul.bf16.gmra.mxu0 %v1003
        %v2160 = vpop.f32.mrf.mxu0
        %v2161 = vadd.f32 %v2072, %v2160
        %v2162 = vpop.f32.mrf.mxu0
        %v2163 = vadd.f32 %v2074, %v2162
        %2164 = vmatmul.bf16.gmra.mxu0 %v1012
        %v2165 = vpop.f32.mrf.mxu0
        %v2166 = vadd.f32 %v2077, %v2165
        %v2167 = vpop.f32.mrf.mxu0
        %v2168 = vadd.f32 %v2079, %v2167
        %2169 = vmatmul.bf16.gmra.mxu0 %v1021
        %v2170 = vpop.f32.mrf.mxu0
        %v2171 = vadd.f32 %v2082, %v2170
        %v2172 = vpop.f32.mrf.mxu0
        %v2173 = vadd.f32 %v2084, %v2172
        %2174 = vmatmul.bf16.gmra.mxu0 %v1030
        %v2175 = vpop.f32.mrf.mxu0
        %v2176 = vadd.f32 %v2087, %v2175
        %v2177 = vpop.f32.mrf.mxu0
        %v2178 = vadd.f32 %v2089, %v2177
        %2179 = vmatmul.bf16.gmra.mxu0 %v1039
        %v2180 = vpop.f32.mrf.mxu0
        %v2181 = vadd.f32 %v2092, %v2180
        %v2182 = vpop.f32.mrf.mxu0
        %v2183 = vadd.f32 %v2094, %v2182
        %2184 = vmatmul.bf16.gmra.mxu0 %v1048
        %v2185 = vpop.f32.mrf.mxu0
        %v2186 = vadd.f32 %v2097, %v2185
        %v2187 = vpop.f32.mrf.mxu0
        %v2188 = vadd.f32 %v2099, %v2187
        %2189 = vmatmul.bf16.gmra.mxu0 %v1057
        %v2190 = vpop.f32.mrf.mxu0
        %v2191 = vadd.f32 %v2102, %v2190
        %v2192 = vpop.f32.mrf.mxu0
        %v2193 = vadd.f32 %v2104, %v2192
        %2194 = vmatmul.bf16.gmra.mxu0 %v1066
        %v2195 = vpop.f32.mrf.mxu0
        %v2196 = vadd.f32 %v2107, %v2195
        %v2197 = vpop.f32.mrf.mxu0
        %v2198 = vadd.f32 %v2109, %v2197
        %2199 = vmatmul.bf16.gmra.mxu0 %v1075
        %v2200 = vpop.f32.mrf.mxu0
        %v2201 = vadd.f32 %v2112, %v2200
        %v2202 = vpop.f32.mrf.mxu0
        %v2203 = vadd.f32 %v2114, %v2202
        %2204 = vmatmul.bf16.gmra.mxu0 %v1084
        %v2205 = vpop.f32.mrf.mxu0
        %v2206 = vadd.f32 %v2117, %v2205
        %v2207 = vpop.f32.mrf.mxu0
        %v2208 = vadd.f32 %v2119, %v2207
        %2209 = vmatmul.bf16.gmra.mxu0 %v1093
        %v2210 = vpop.f32.mrf.mxu0
        %v2211 = vadd.f32 %v2122, %v2210
        %v2212 = vpop.f32.mrf.mxu0
        %v2213 = vadd.f32 %v2124, %v2212
        %2214 = vmatmul.bf16.gmra.mxu0 %v1102
        %v2215 = vpop.f32.mrf.mxu0
        %v2216 = vadd.f32 %v2127, %v2215
        %v2217 = vpop.f32.mrf.mxu0
        %v2218 = vadd.f32 %v2129, %v2217
        %2219 = vdwg.mxu0
        %2220 = vmatpush.bf16.msra.mxu0 %v1597
        %2221 = vmatpush.bf16.msra.mxu0 %v1596
        %2222 = vmatpush.bf16.msra.mxu0 %v1595
        %2223 = vmatpush.bf16.msra.mxu0 %v1594
        %2224 = vmatpush.bf16.msra.mxu0 %v1593
        %2225 = vmatpush.bf16.msra.mxu0 %v1592
        %2226 = vmatpush.bf16.msra.mxu0 %v1591
        %2227 = vmatpush.bf16.msra.mxu0 %v1590
        %2228 = vmatmul.bf16.gmra.mxu0 %v968
        %v2229 = vpop.f32.mrf.mxu0
        %v2230 = vadd.f32 %v2141, %v2229
        %v2231 = vpop.f32.mrf.mxu0
        %v2232 = vadd.f32 %v2143, %v2231
        %2233 = vmatmul.bf16.gmra.mxu0 %v977
        %v2234 = vpop.f32.mrf.mxu0
        %v2235 = vadd.f32 %v2146, %v2234
        %v2236 = vpop.f32.mrf.mxu0
        %v2237 = vadd.f32 %v2148, %v2236
        %2238 = vmatmul.bf16.gmra.mxu0 %v986
        %v2239 = vpop.f32.mrf.mxu0
        %v2240 = vadd.f32 %v2151, %v2239
        %v2241 = vpop.f32.mrf.mxu0
        %v2242 = vadd.f32 %v2153, %v2241
        %2243 = vmatmul.bf16.gmra.mxu0 %v995
        %v2244 = vpop.f32.mrf.mxu0
        %v2245 = vadd.f32 %v2156, %v2244
        %v2246 = vpop.f32.mrf.mxu0
        %v2247 = vadd.f32 %v2158, %v2246
        %2248 = vmatmul.bf16.gmra.mxu0 %v1004
        %v2249 = vpop.f32.mrf.mxu0
        %v2250 = vadd.f32 %v2161, %v2249
        %v2251 = vpop.f32.mrf.mxu0
        %v2252 = vadd.f32 %v2163, %v2251
        %2253 = vmatmul.bf16.gmra.mxu0 %v1013
        %v2254 = vpop.f32.mrf.mxu0
        %v2255 = vadd.f32 %v2166, %v2254
        %v2256 = vpop.f32.mrf.mxu0
        %v2257 = vadd.f32 %v2168, %v2256
        %2258 = vmatmul.bf16.gmra.mxu0 %v1022
        %v2259 = vpop.f32.mrf.mxu0
        %v2260 = vadd.f32 %v2171, %v2259
        %v2261 = vpop.f32.mrf.mxu0
        %v2262 = vadd.f32 %v2173, %v2261
        %2263 = vmatmul.bf16.gmra.mxu0 %v1031
        %v2264 = vpop.f32.mrf.mxu0
        %v2265 = vadd.f32 %v2176, %v2264
        %v2266 = vpop.f32.mrf.mxu0
        %v2267 = vadd.f32 %v2178, %v2266
        %2268 = vmatmul.bf16.gmra.mxu0 %v1040
        %v2269 = vpop.f32.mrf.mxu0
        %v2270 = vadd.f32 %v2181, %v2269
        %v2271 = vpop.f32.mrf.mxu0
        %v2272 = vadd.f32 %v2183, %v2271
        %2273 = vmatmul.bf16.gmra.mxu0 %v1049
        %v2274 = vpop.f32.mrf.mxu0
        %v2275 = vadd.f32 %v2186, %v2274
        %v2276 = vpop.f32.mrf.mxu0
        %v2277 = vadd.f32 %v2188, %v2276
        %2278 = vmatmul.bf16.gmra.mxu0 %v1058
        %v2279 = vpop.f32.mrf.mxu0
        %v2280 = vadd.f32 %v2191, %v2279
        %v2281 = vpop.f32.mrf.mxu0
        %v2282 = vadd.f32 %v2193, %v2281
        %2283 = vmatmul.bf16.gmra.mxu0 %v1067
        %v2284 = vpop.f32.mrf.mxu0
        %v2285 = vadd.f32 %v2196, %v2284
        %v2286 = vpop.f32.mrf.mxu0
        %v2287 = vadd.f32 %v2198, %v2286
        %2288 = vmatmul.bf16.gmra.mxu0 %v1076
        %v2289 = vpop.f32.mrf.mxu0
        %v2290 = vadd.f32 %v2201, %v2289
        %v2291 = vpop.f32.mrf.mxu0
        %v2292 = vadd.f32 %v2203, %v2291
        %2293 = vmatmul.bf16.gmra.mxu0 %v1085
        %v2294 = vpop.f32.mrf.mxu0
        %v2295 = vadd.f32 %v2206, %v2294
        %v2296 = vpop.f32.mrf.mxu0
        %v2297 = vadd.f32 %v2208, %v2296
        %2298 = vmatmul.bf16.gmra.mxu0 %v1094
        %v2299 = vpop.f32.mrf.mxu0
        %v2300 = vadd.f32 %v2211, %v2299
        %v2301 = vpop.f32.mrf.mxu0
        %v2302 = vadd.f32 %v2213, %v2301
        %2303 = vmatmul.bf16.gmra.mxu0 %v1103
        %v2304 = vpop.f32.mrf.mxu0
        %v2305 = vadd.f32 %v2216, %v2304
        %v2306 = vpop.f32.mrf.mxu0
        %v2307 = vadd.f32 %v2218, %v2306
        %2308 = vdwg.mxu0
        %2309 = vmatpush.bf16.msra.mxu0 %v1605
        %2310 = vmatpush.bf16.msra.mxu0 %v1604
        %2311 = vmatpush.bf16.msra.mxu0 %v1603
        %2312 = vmatpush.bf16.msra.mxu0 %v1602
        %2313 = vmatpush.bf16.msra.mxu0 %v1601
        %2314 = vmatpush.bf16.msra.mxu0 %v1600
        %2315 = vmatpush.bf16.msra.mxu0 %v1599
        %2316 = vmatpush.bf16.msra.mxu0 %v1598
        %2317 = vmatmul.bf16.gmra.mxu0 %v969
        %v2318 = vpop.f32.mrf.mxu0
        %v2319 = vadd.f32 %v2230, %v2318
        %v2320 = vpop.f32.mrf.mxu0
        %v2321 = vadd.f32 %v2232, %v2320
        %2322 = vmatmul.bf16.gmra.mxu0 %v978
        %v2323 = vpop.f32.mrf.mxu0
        %v2324 = vadd.f32 %v2235, %v2323
        %v2325 = vpop.f32.mrf.mxu0
        %v2326 = vadd.f32 %v2237, %v2325
        %2327 = vmatmul.bf16.gmra.mxu0 %v987
        %v2328 = vpop.f32.mrf.mxu0
        %v2329 = vadd.f32 %v2240, %v2328
        %v2330 = vpop.f32.mrf.mxu0
        %v2331 = vadd.f32 %v2242, %v2330
        %2332 = vmatmul.bf16.gmra.mxu0 %v996
        %v2333 = vpop.f32.mrf.mxu0
        %v2334 = vadd.f32 %v2245, %v2333
        %v2335 = vpop.f32.mrf.mxu0
        %v2336 = vadd.f32 %v2247, %v2335
        %2337 = vmatmul.bf16.gmra.mxu0 %v1005
        %v2338 = vpop.f32.mrf.mxu0
        %v2339 = vadd.f32 %v2250, %v2338
        %v2340 = vpop.f32.mrf.mxu0
        %v2341 = vadd.f32 %v2252, %v2340
        %2342 = vmatmul.bf16.gmra.mxu0 %v1014
        %v2343 = vpop.f32.mrf.mxu0
        %v2344 = vadd.f32 %v2255, %v2343
        %v2345 = vpop.f32.mrf.mxu0
        %v2346 = vadd.f32 %v2257, %v2345
        %2347 = vmatmul.bf16.gmra.mxu0 %v1023
        %v2348 = vpop.f32.mrf.mxu0
        %v2349 = vadd.f32 %v2260, %v2348
        %v2350 = vpop.f32.mrf.mxu0
        %v2351 = vadd.f32 %v2262, %v2350
        %2352 = vmatmul.bf16.gmra.mxu0 %v1032
        %v2353 = vpop.f32.mrf.mxu0
        %v2354 = vadd.f32 %v2265, %v2353
        %v2355 = vpop.f32.mrf.mxu0
        %v2356 = vadd.f32 %v2267, %v2355
        %2357 = vmatmul.bf16.gmra.mxu0 %v1041
        %v2358 = vpop.f32.mrf.mxu0
        %v2359 = vadd.f32 %v2270, %v2358
        %v2360 = vpop.f32.mrf.mxu0
        %v2361 = vadd.f32 %v2272, %v2360
        %2362 = vmatmul.bf16.gmra.mxu0 %v1050
        %v2363 = vpop.f32.mrf.mxu0
        %v2364 = vadd.f32 %v2275, %v2363
        %v2365 = vpop.f32.mrf.mxu0
        %v2366 = vadd.f32 %v2277, %v2365
        %2367 = vmatmul.bf16.gmra.mxu0 %v1059
        %v2368 = vpop.f32.mrf.mxu0
        %v2369 = vadd.f32 %v2280, %v2368
        %v2370 = vpop.f32.mrf.mxu0
        %v2371 = vadd.f32 %v2282, %v2370
        %2372 = vmatmul.bf16.gmra.mxu0 %v1068
        %v2373 = vpop.f32.mrf.mxu0
        %v2374 = vadd.f32 %v2285, %v2373
        %v2375 = vpop.f32.mrf.mxu0
        %v2376 = vadd.f32 %v2287, %v2375
        %2377 = vmatmul.bf16.gmra.mxu0 %v1077
        %v2378 = vpop.f32.mrf.mxu0
        %v2379 = vadd.f32 %v2290, %v2378
        %v2380 = vpop.f32.mrf.mxu0
        %v2381 = vadd.f32 %v2292, %v2380
        %2382 = vmatmul.bf16.gmra.mxu0 %v1086
        %v2383 = vpop.f32.mrf.mxu0
        %v2384 = vadd.f32 %v2295, %v2383
        %v2385 = vpop.f32.mrf.mxu0
        %v2386 = vadd.f32 %v2297, %v2385
        %2387 = vmatmul.bf16.gmra.mxu0 %v1095
        %v2388 = vpop.f32.mrf.mxu0
        %v2389 = vadd.f32 %v2300, %v2388
        %v2390 = vpop.f32.mrf.mxu0
        %v2391 = vadd.f32 %v2302, %v2390
        %2392 = vmatmul.bf16.gmra.mxu0 %v1104
        %v2393 = vpop.f32.mrf.mxu0
        %v2394 = vadd.f32 %v2305, %v2393
        %v2395 = vpop.f32.mrf.mxu0
        %v2396 = vadd.f32 %v2307, %v2395
        %2397 = vdwg.mxu0
        %2398 = vmatpush.bf16.msra.mxu0 %v1613
        %2399 = vmatpush.bf16.msra.mxu0 %v1612
        %2400 = vmatpush.bf16.msra.mxu0 %v1611
        %2401 = vmatpush.bf16.msra.mxu0 %v1610
        %2402 = vmatpush.bf16.msra.mxu0 %v1609
        %2403 = vmatpush.bf16.msra.mxu0 %v1608
        %2404 = vmatpush.bf16.msra.mxu0 %v1607
        %2405 = vmatpush.bf16.msra.mxu0 %v1606
        %2406 = vmatmul.bf16.gmra.mxu0 %v970
        %v2407 = vpop.f32.mrf.mxu0
        %v2408 = vadd.f32 %v2319, %v2407
        %v2409 = vpop.f32.mrf.mxu0
        %v2410 = vadd.f32 %v2321, %v2409
        %2411 = vmatmul.bf16.gmra.mxu0 %v979
        %v2412 = vpop.f32.mrf.mxu0
        %v2413 = vadd.f32 %v2324, %v2412
        %v2414 = vpop.f32.mrf.mxu0
        %v2415 = vadd.f32 %v2326, %v2414
        %2416 = vmatmul.bf16.gmra.mxu0 %v988
        %v2417 = vpop.f32.mrf.mxu0
        %v2418 = vadd.f32 %v2329, %v2417
        %v2419 = vpop.f32.mrf.mxu0
        %v2420 = vadd.f32 %v2331, %v2419
        %2421 = vmatmul.bf16.gmra.mxu0 %v997
        %v2422 = vpop.f32.mrf.mxu0
        %v2423 = vadd.f32 %v2334, %v2422
        %v2424 = vpop.f32.mrf.mxu0
        %v2425 = vadd.f32 %v2336, %v2424
        %2426 = vmatmul.bf16.gmra.mxu0 %v1006
        %v2427 = vpop.f32.mrf.mxu0
        %v2428 = vadd.f32 %v2339, %v2427
        %v2429 = vpop.f32.mrf.mxu0
        %v2430 = vadd.f32 %v2341, %v2429
        %2431 = vmatmul.bf16.gmra.mxu0 %v1015
        %v2432 = vpop.f32.mrf.mxu0
        %v2433 = vadd.f32 %v2344, %v2432
        %v2434 = vpop.f32.mrf.mxu0
        %v2435 = vadd.f32 %v2346, %v2434
        %2436 = vmatmul.bf16.gmra.mxu0 %v1024
        %v2437 = vpop.f32.mrf.mxu0
        %v2438 = vadd.f32 %v2349, %v2437
        %v2439 = vpop.f32.mrf.mxu0
        %v2440 = vadd.f32 %v2351, %v2439
        %2441 = vmatmul.bf16.gmra.mxu0 %v1033
        %v2442 = vpop.f32.mrf.mxu0
        %v2443 = vadd.f32 %v2354, %v2442
        %v2444 = vpop.f32.mrf.mxu0
        %v2445 = vadd.f32 %v2356, %v2444
        %2446 = vmatmul.bf16.gmra.mxu0 %v1042
        %v2447 = vpop.f32.mrf.mxu0
        %v2448 = vadd.f32 %v2359, %v2447
        %v2449 = vpop.f32.mrf.mxu0
        %v2450 = vadd.f32 %v2361, %v2449
        %2451 = vmatmul.bf16.gmra.mxu0 %v1051
        %v2452 = vpop.f32.mrf.mxu0
        %v2453 = vadd.f32 %v2364, %v2452
        %v2454 = vpop.f32.mrf.mxu0
        %v2455 = vadd.f32 %v2366, %v2454
        %2456 = vmatmul.bf16.gmra.mxu0 %v1060
        %v2457 = vpop.f32.mrf.mxu0
        %v2458 = vadd.f32 %v2369, %v2457
        %v2459 = vpop.f32.mrf.mxu0
        %v2460 = vadd.f32 %v2371, %v2459
        %2461 = vmatmul.bf16.gmra.mxu0 %v1069
        %v2462 = vpop.f32.mrf.mxu0
        %v2463 = vadd.f32 %v2374, %v2462
        %v2464 = vpop.f32.mrf.mxu0
        %v2465 = vadd.f32 %v2376, %v2464
        %2466 = vmatmul.bf16.gmra.mxu0 %v1078
        %v2467 = vpop.f32.mrf.mxu0
        %v2468 = vadd.f32 %v2379, %v2467
        %v2469 = vpop.f32.mrf.mxu0
        %v2470 = vadd.f32 %v2381, %v2469
        %2471 = vmatmul.bf16.gmra.mxu0 %v1087
        %v2472 = vpop.f32.mrf.mxu0
        %v2473 = vadd.f32 %v2384, %v2472
        %v2474 = vpop.f32.mrf.mxu0
        %v2475 = vadd.f32 %v2386, %v2474
        %2476 = vmatmul.bf16.gmra.mxu0 %v1096
        %v2477 = vpop.f32.mrf.mxu0
        %v2478 = vadd.f32 %v2389, %v2477
        %v2479 = vpop.f32.mrf.mxu0
        %v2480 = vadd.f32 %v2391, %v2479
        %2481 = vmatmul.bf16.gmra.mxu0 %v1105
        %v2482 = vpop.f32.mrf.mxu0
        %v2483 = vadd.f32 %v2394, %v2482
        %v2484 = vpop.f32.mrf.mxu0
        %v2485 = vadd.f32 %v2396, %v2484
        %2486 = vdwg.mxu0
        %v2487 = vmax.f32 %v2408, 0.0
        %v2488 = vmax.f32 %v2410, 0.0
        %v2489 = vmax.f32 %v2413, 0.0
        %v2490 = vmax.f32 %v2415, 0.0
        %v2491 = vmax.f32 %v2418, 0.0
        %v2492 = vmax.f32 %v2420, 0.0
        %v2493 = vmax.f32 %v2423, 0.0
        %v2494 = vmax.f32 %v2425, 0.0
        %v2495 = vmax.f32 %v2428, 0.0
        %v2496 = vmax.f32 %v2430, 0.0
        %v2497 = vmax.f32 %v2433, 0.0
        %v2498 = vmax.f32 %v2435, 0.0
        %v2499 = vmax.f32 %v2438, 0.0
        %v2500 = vmax.f32 %v2440, 0.0
        %v2501 = vmax.f32 %v2443, 0.0
        %v2502 = vmax.f32 %v2445, 0.0
        %v2503 = vmax.f32 %v2448, 0.0
        %v2504 = vmax.f32 %v2450, 0.0
        %v2505 = vmax.f32 %v2453, 0.0
        %v2506 = vmax.f32 %v2455, 0.0
        %v2507 = vmax.f32 %v2458, 0.0
        %v2508 = vmax.f32 %v2460, 0.0
        %v2509 = vmax.f32 %v2463, 0.0
        %v2510 = vmax.f32 %v2465, 0.0
        %v2511 = vmax.f32 %v2468, 0.0
        %v2512 = vmax.f32 %v2470, 0.0
        %v2513 = vmax.f32 %v2473, 0.0
        %v2514 = vmax.f32 %v2475, 0.0
        %v2515 = vmax.f32 %v2478, 0.0
        %v2516 = vmax.f32 %v2480, 0.0
        %v2517 = vmax.f32 %v2483, 0.0
        %v2518 = vmax.f32 %v2485, 0.0
        %v2519 = vpack.c.bf16 %v2488, %v2487
        %v2520 = vpack.c.bf16 %v2490, %v2489
        %v2521 = vpack.c.bf16 %v2492, %v2491
        %v2522 = vpack.c.bf16 %v2494, %v2493
        %v2523 = vpack.c.bf16 %v2496, %v2495
        %v2524 = vpack.c.bf16 %v2498, %v2497
        %v2525 = vpack.c.bf16 %v2500, %v2499
        %v2526 = vpack.c.bf16 %v2502, %v2501
        %v2527 = vpack.c.bf16 %v2504, %v2503
        %v2528 = vpack.c.bf16 %v2506, %v2505
        %v2529 = vpack.c.bf16 %v2508, %v2507
        %v2530 = vpack.c.bf16 %v2510, %v2509
        %v2531 = vpack.c.bf16 %v2512, %v2511
        %v2532 = vpack.c.bf16 %v2514, %v2513
        %v2533 = vpack.c.bf16 %v2516, %v2515
        %v2534 = vpack.c.bf16 %v2518, %v2517
        %v2535 = vld [vmem:[#allocation9] sm:$0xf]
        %v2536 = vld [vmem:[#allocation9 + $0x4] sm:$0xf]
        %v2537 = vld [vmem:[#allocation9 + $0x8] sm:$0xf]
        %v2538 = vld [vmem:[#allocation9 + $0xc] sm:$0xf]
        %v2539 = vld [vmem:[#allocation9 + $0x10] sm:$0xf]
        %v2540 = vld [vmem:[#allocation9 + $0x14] sm:$0xf]
        %v2541 = vld [vmem:[#allocation9 + $0x18] sm:$0xf]
        %v2542 = vld [vmem:[#allocation9 + $0x1c] sm:$0xf]
        %v2543 = vld [vmem:[#allocation9 + $0x20] sm:$0xf]
        %v2544 = vld [vmem:[#allocation9 + $0x24] sm:$0xf]
        %v2545 = vld [vmem:[#allocation9 + $0x28] sm:$0xf]
        %v2546 = vld [vmem:[#allocation9 + $0x2c] sm:$0xf]
        %v2547 = vld [vmem:[#allocation9 + $0x30] sm:$0xf]
        %v2548 = vld [vmem:[#allocation9 + $0x34] sm:$0xf]
        %v2549 = vld [vmem:[#allocation9 + $0x38] sm:$0xf]
        %v2550 = vld [vmem:[#allocation9 + $0x3c] sm:$0xf]
        %v2551 = vld [vmem:[%s6] sm:$0x1]
        %v2553 = vperm.slane %v2551, 0
        %v2571 = vunpack.c.l.b16 %v2535
        %v2572 = vunpack.c.l.b16 %v2536
        %v2573 = vunpack.c.l.b16 %v2537
        %v2574 = vunpack.c.l.b16 %v2538
        %v2575 = vunpack.c.l.b16 %v2539
        %v2576 = vunpack.c.l.b16 %v2540
        %v2577 = vunpack.c.l.b16 %v2541
        %v2578 = vunpack.c.l.b16 %v2542
        %v2579 = vunpack.c.l.b16 %v2543
        %v2580 = vunpack.c.l.b16 %v2544
        %v2581 = vunpack.c.l.b16 %v2545
        %v2582 = vunpack.c.l.b16 %v2546
        %v2583 = vunpack.c.l.b16 %v2547
        %v2584 = vunpack.c.l.b16 %v2548
        %v2585 = vunpack.c.l.b16 %v2549
        %v2586 = vunpack.c.l.b16 %v2550
        %v2587 = vpack.c.b16 %v2572, %v2571
        %v2588 = vpack.c.b16 %v2574, %v2573
        %v2589 = vpack.c.b16 %v2576, %v2575
        %v2590 = vpack.c.b16 %v2578, %v2577
        %v2591 = vpack.c.b16 %v2580, %v2579
        %v2592 = vpack.c.b16 %v2582, %v2581
        %v2593 = vpack.c.b16 %v2584, %v2583
        %v2594 = vpack.c.b16 %v2586, %v2585
        %2603 = vmatpush.bf16.msra.mxu0 %v2594
        %2604 = vmatpush.bf16.msra.mxu0 %v2593
        %2605 = vmatpush.bf16.msra.mxu0 %v2592
        %2606 = vmatpush.bf16.msra.mxu0 %v2591
        %2607 = vmatpush.bf16.msra.mxu0 %v2590
        %2608 = vmatpush.bf16.msra.mxu0 %v2589
        %2609 = vmatpush.bf16.msra.mxu0 %v2588
        %2610 = vmatpush.bf16.msra.mxu0 %v2587
        %2611 = vmatmul.bf16.gmra.mxu0 %v2519
        %v2612 = vpop.f32.mrf.mxu0
        %v2613 = vadd.f32 %v2553, %v2612
        %v2614 = vpop.f32.mrf.mxu0
        %v2615 = vadd.f32 %v2553, %v2614
        %2616 = vmatmul.bf16.gmra.mxu0 %v2520
        %v2617 = vpop.f32.mrf.mxu0
        %v2618 = vadd.f32 %v2553, %v2617
        %v2619 = vpop.f32.mrf.mxu0
        %v2620 = vadd.f32 %v2553, %v2619
        %2621 = vmatmul.bf16.gmra.mxu0 %v2521
        %v2622 = vpop.f32.mrf.mxu0
        %v2623 = vadd.f32 %v2553, %v2622
        %v2624 = vpop.f32.mrf.mxu0
        %v2625 = vadd.f32 %v2553, %v2624
        %2626 = vmatmul.bf16.gmra.mxu0 %v2522
        %v2627 = vpop.f32.mrf.mxu0
        %v2628 = vadd.f32 %v2553, %v2627
        %v2629 = vpop.f32.mrf.mxu0
        %v2630 = vadd.f32 %v2553, %v2629
        %2631 = vmatmul.bf16.gmra.mxu0 %v2523
        %v2632 = vpop.f32.mrf.mxu0
        %v2633 = vadd.f32 %v2553, %v2632
        %v2634 = vpop.f32.mrf.mxu0
        %v2635 = vadd.f32 %v2553, %v2634
        %2636 = vmatmul.bf16.gmra.mxu0 %v2524
        %v2637 = vpop.f32.mrf.mxu0
        %v2638 = vadd.f32 %v2553, %v2637
        %v2639 = vpop.f32.mrf.mxu0
        %v2640 = vadd.f32 %v2553, %v2639
        %2641 = vmatmul.bf16.gmra.mxu0 %v2525
        %v2642 = vpop.f32.mrf.mxu0
        %v2643 = vadd.f32 %v2553, %v2642
        %v2644 = vpop.f32.mrf.mxu0
        %v2645 = vadd.f32 %v2553, %v2644
        %2646 = vmatmul.bf16.gmra.mxu0 %v2526
        %v2647 = vpop.f32.mrf.mxu0
        %v2648 = vadd.f32 %v2553, %v2647
        %v2649 = vpop.f32.mrf.mxu0
        %v2650 = vadd.f32 %v2553, %v2649
        %2651 = vmatmul.bf16.gmra.mxu0 %v2527
        %v2652 = vpop.f32.mrf.mxu0
        %v2653 = vadd.f32 %v2553, %v2652
        %v2654 = vpop.f32.mrf.mxu0
        %v2655 = vadd.f32 %v2553, %v2654
        %2656 = vmatmul.bf16.gmra.mxu0 %v2528
        %v2657 = vpop.f32.mrf.mxu0
        %v2658 = vadd.f32 %v2553, %v2657
        %v2659 = vpop.f32.mrf.mxu0
        %v2660 = vadd.f32 %v2553, %v2659
        %2661 = vmatmul.bf16.gmra.mxu0 %v2529
        %v2662 = vpop.f32.mrf.mxu0
        %v2663 = vadd.f32 %v2553, %v2662
        %v2664 = vpop.f32.mrf.mxu0
        %v2665 = vadd.f32 %v2553, %v2664
        %2666 = vmatmul.bf16.gmra.mxu0 %v2530
        %v2667 = vpop.f32.mrf.mxu0
        %v2668 = vadd.f32 %v2553, %v2667
        %v2669 = vpop.f32.mrf.mxu0
        %v2670 = vadd.f32 %v2553, %v2669
        %2671 = vmatmul.bf16.gmra.mxu0 %v2531
        %v2672 = vpop.f32.mrf.mxu0
        %v2673 = vadd.f32 %v2553, %v2672
        %v2674 = vpop.f32.mrf.mxu0
        %v2675 = vadd.f32 %v2553, %v2674
        %2676 = vmatmul.bf16.gmra.mxu0 %v2532
        %v2677 = vpop.f32.mrf.mxu0
        %v2678 = vadd.f32 %v2553, %v2677
        %v2679 = vpop.f32.mrf.mxu0
        %v2680 = vadd.f32 %v2553, %v2679
        %2681 = vmatmul.bf16.gmra.mxu0 %v2533
        %v2682 = vpop.f32.mrf.mxu0
        %v2683 = vadd.f32 %v2553, %v2682
        %v2684 = vpop.f32.mrf.mxu0
        %v2685 = vadd.f32 %v2553, %v2684
        %2686 = vmatmul.bf16.gmra.mxu0 %v2534
        %v2687 = vpop.f32.mrf.mxu0
        %v2688 = vadd.f32 %v2553, %v2687
        %v2689 = vpop.f32.mrf.mxu0
        %v2690 = vadd.f32 %v2553, %v2689
        %2691 = vdwg.mxu0
        %v2692 = vadd.f32 %v2613, %v349
        %v2693 = vadd.f32 %v2615, %v350
        %v2694 = vadd.f32 %v2618, %v351
        %v2695 = vadd.f32 %v2620, %v352
        %v2696 = vadd.f32 %v2623, %v353
        %v2697 = vadd.f32 %v2625, %v354
        %v2698 = vadd.f32 %v2628, %v355
        %v2699 = vadd.f32 %v2630, %v356
        %v2700 = vadd.f32 %v2633, %v357
        %v2701 = vadd.f32 %v2635, %v358
        %v2702 = vadd.f32 %v2638, %v359
        %v2703 = vadd.f32 %v2640, %v360
        %v2704 = vadd.f32 %v2643, %v361
        %v2705 = vadd.f32 %v2645, %v362
        %v2706 = vadd.f32 %v2648, %v363
        %v2707 = vadd.f32 %v2650, %v364
        %v2708 = vadd.f32 %v2653, %v365
        %v2709 = vadd.f32 %v2655, %v366
        %v2710 = vadd.f32 %v2658, %v367
        %v2711 = vadd.f32 %v2660, %v368
        %v2712 = vadd.f32 %v2663, %v369
        %v2713 = vadd.f32 %v2665, %v370
        %v2714 = vadd.f32 %v2668, %v371
        %v2715 = vadd.f32 %v2670, %v372
        %v2716 = vadd.f32 %v2673, %v373
        %v2717 = vadd.f32 %v2675, %v374
        %v2718 = vadd.f32 %v2678, %v375
        %v2719 = vadd.f32 %v2680, %v376
        %v2720 = vadd.f32 %v2683, %v377
        %v2721 = vadd.f32 %v2685, %v378
        %v2722 = vadd.f32 %v2688, %v379
        %v2723 = vadd.f32 %v2690, %v380
        %v2724 = vmax.f32 %v2692, 0.0
        %v2725 = vmax.f32 %v2693, 0.0
        %v2726 = vmax.f32 %v2694, 0.0
        %v2727 = vmax.f32 %v2695, 0.0
        %v2728 = vmax.f32 %v2696, 0.0
        %v2729 = vmax.f32 %v2697, 0.0
        %v2730 = vmax.f32 %v2698, 0.0
        %v2731 = vmax.f32 %v2699, 0.0
        %v2732 = vmax.f32 %v2700, 0.0
        %v2733 = vmax.f32 %v2701, 0.0
        %v2734 = vmax.f32 %v2702, 0.0
        %v2735 = vmax.f32 %v2703, 0.0
        %v2736 = vmax.f32 %v2704, 0.0
        %v2737 = vmax.f32 %v2705, 0.0
        %v2738 = vmax.f32 %v2706, 0.0
        %v2739 = vmax.f32 %v2707, 0.0
        %v2740 = vmax.f32 %v2708, 0.0
        %v2741 = vmax.f32 %v2709, 0.0
        %v2742 = vmax.f32 %v2710, 0.0
        %v2743 = vmax.f32 %v2711, 0.0
        %v2744 = vmax.f32 %v2712, 0.0
        %v2745 = vmax.f32 %v2713, 0.0
        %v2746 = vmax.f32 %v2714, 0.0
        %v2747 = vmax.f32 %v2715, 0.0
        %v2748 = vmax.f32 %v2716, 0.0
        %v2749 = vmax.f32 %v2717, 0.0
        %v2750 = vmax.f32 %v2718, 0.0
        %v2751 = vmax.f32 %v2719, 0.0
        %v2752 = vmax.f32 %v2720, 0.0
        %v2753 = vmax.f32 %v2721, 0.0
        %v2754 = vmax.f32 %v2722, 0.0
        %v2755 = vmax.f32 %v2723, 0.0
        %2756 = vst [vmem:[%s348] sm:$0xff] %v2724
        %2757 = vst [vmem:[%s348 + $0x8] sm:$0xff] %v2725
        %2758 = vst [vmem:[%s348 + $0x10] sm:$0xff] %v2726
        %2759 = vst [vmem:[%s348 + $0x18] sm:$0xff] %v2727
        %2760 = vst [vmem:[%s348 + $0x20] sm:$0xff] %v2728
        %2761 = vst [vmem:[%s348 + $0x28] sm:$0xff] %v2729
        %2762 = vst [vmem:[%s348 + $0x30] sm:$0xff] %v2730
        %2763 = vst [vmem:[%s348 + $0x38] sm:$0xff] %v2731
        %2764 = vst [vmem:[%s348 + $0x40] sm:$0xff] %v2732
        %2765 = vst [vmem:[%s348 + $0x48] sm:$0xff] %v2733
        %2766 = vst [vmem:[%s348 + $0x50] sm:$0xff] %v2734
        %2767 = vst [vmem:[%s348 + $0x58] sm:$0xff] %v2735
        %2768 = vst [vmem:[%s348 + $0x60] sm:$0xff] %v2736
        %2769 = vst [vmem:[%s348 + $0x68] sm:$0xff] %v2737
        %2770 = vst [vmem:[%s348 + $0x70] sm:$0xff] %v2738
        %2771 = vst [vmem:[%s348 + $0x78] sm:$0xff] %v2739
        %2772 = vst [vmem:[%s348 + $0x80] sm:$0xff] %v2740
        %2773 = vst [vmem:[%s348 + $0x88] sm:$0xff] %v2741
        %2774 = vst [vmem:[%s348 + $0x90] sm:$0xff] %v2742
        %2775 = vst [vmem:[%s348 + $0x98] sm:$0xff] %v2743
        %2776 = vst [vmem:[%s348 + $0xa0] sm:$0xff] %v2744
        %2777 = vst [vmem:[%s348 + $0xa8] sm:$0xff] %v2745
        %2778 = vst [vmem:[%s348 + $0xb0] sm:$0xff] %v2746
        %2779 = vst [vmem:[%s348 + $0xb8] sm:$0xff] %v2747
        %2780 = vst [vmem:[%s348 + $0xc0] sm:$0xff] %v2748
        %2781 = vst [vmem:[%s348 + $0xc8] sm:$0xff] %v2749
        %2782 = vst [vmem:[%s348 + $0xd0] sm:$0xff] %v2750
        %2783 = vst [vmem:[%s348 + $0xd8] sm:$0xff] %v2751
        %2784 = vst [vmem:[%s348 + $0xe0] sm:$0xff] %v2752
        %2785 = vst [vmem:[%s348 + $0xe8] sm:$0xff] %v2753
        %2786 = vst [vmem:[%s348 + $0xf0] sm:$0xff] %v2754
        %2787 = vst [vmem:[%s348 + $0xf8] sm:$0xff] %v2755
        %s2788 = sand.u32 %s186, 1
        %s2789 = scalar_lea.sflag [#allocation5], %s2788
        %s2790 = sand.u32 %s186, 1
        %s2791 = smul.addr %s2790, 256
        %s2792 = scalar_lea.vmem [#allocation11], %s2791
        // Predicated region
        $region65: #{tpu_custom_call.1} parent=47 // pred_check
          %p2793 = pneg %p196
        $region66: #{tpu_custom_call.1} parent=47 // pred_check_branch
          %2795 = sbr.rel (%p2793) target = $region68
        $region67: #{tpu_custom_call.1} parent=47 // pred_region
          %2797 = vsyncadd %s2789, 0
          %s2798 = smul.addr %s26, 32
          %s2799 = smul.addr %s2798, 8
          %s2800 = scalar_lea.hbm %s7, %s2799
          %s2801 = sshll.u32 %s2792, 4
          %s2802 = int_to_ptr.vmem [resolvable:$true] %s2801
          %s2803 = sshll.u32 %s2800, 4
          %s2804 = int_to_ptr.hbm [resolvable:$true] %s2803
          %2809 = dma.vmem_to_hbm [thread:$0]  %s2802, 4096, %s2804, %s2789, 128, 128, 8
        $region68: #{tpu_custom_call.1} parent=47 // pred_fallthru
          _
      $region48: #{tpu_custom_call.1} parent=5 // pred_fallthru
        _
      %p2810 = scmp.le.s32.totalorder 2, %s21
      // Predicated region
      $region69: #{tpu_custom_call.1} parent=5 // pred_check
        %p2811 = pneg %p2810
      $region70: #{tpu_custom_call.1} parent=5 // pred_check_branch
        %2813 = sbr.rel (%p2811) target = $region72
      $region71: #{tpu_custom_call.1} parent=5 // pred_region
        %s2814 = ssub.s32 %s21, 2
        // Predicated region
        $region73: #{tpu_custom_call.1} parent=71 // pred_check
          %p2815 = pneg %p202
        $region74: #{tpu_custom_call.1} parent=71 // pred_check_branch
          %2817 = sbr.rel (%p2815) target = $region76
        $region75: #{tpu_custom_call.1} parent=71 // pred_region
          %s2818 = sand.u32 %s187, 1
          %s2819 = scalar_lea.sflag [#allocation5], %s2818
          %s2820 = sand.u32 %s187, 1
          %s2821 = smul.addr %s2820, 256
          %s2822 = scalar_lea.vmem [#allocation11], %s2821
          %2824 = dma.done %s2819, 4096
        $region76: #{tpu_custom_call.1} parent=71 // pred_fallthru
          _
      $region72: #{tpu_custom_call.1} parent=5 // pred_fallthru
        _
    $region6: #{tpu_custom_call.1} parent=1 // loop_footer
      %s25 = sadd.s32 1, %s21
    $region7: #{tpu_custom_call.1} parent=1 // loop_footer_branch
      %20 = sbr.rel target = $region3
    $region8: #{tpu_custom_call.1} parent=1 // loop_exit
      _
    %2825 = vsyncpa [#allocation4], 1
    %s2826 = scalar_lea.sflag [#allocation4], 1
    %2827 = vsyncpa %s2826, 1
    %2828 = vsyncpa [#allocation7], 1
    %2829 = vsyncpa [#allocation10], 1
    %2830 = vsyncpa [#allocation5], 1
    %s2831 = scalar_lea.sflag [#allocation5], 1
    %2832 = vsyncpa %s2831, 1

</llo_original>
